<compile_context>
chip_gen: v7x
topology: tpu7x:2x2x1
jax: 0.10.0
libtpu: 0.0.40
codegen_flags: <defaults>
</compile_context>

<pallas_src>
import math

import jax
import jax.numpy as jnp
from jax import lax
from jax.experimental import pallas as pl
from jax.experimental.pallas import tpu as pltpu


# ---------------- configuration (small, consistent with the module) ----------------
B = 2          # batch
S = 8          # sequence length
H = 32         # config.hidden_size
NH = 4         # config.transformer['num_heads']
HD = H // NH   # attention head size
MLP = 64       # config.transformer['mlp_dim']
EPS = 1e-6
VIS = True     # if False, Block.forward returns weights=None
BS = B * S     # rows after folding batch into the sublane axis
BNH = B * NH

W3 = 3 * H                    # fused qkv width (96)
OFF_QKV = 0                   # weight-slab lane offsets
OFF_WO = 3 * H                # 96   (first lane tile = [wqkv | wo])
OFF_W1 = 4 * H                # 128  (second lane tile = [w1 | w2^T])
OFF_W2T = 4 * H + MLP         # 192
WSLAB_W = 4 * H + 2 * MLP     # 256


def _layernorm(v, g, b):
    mu = jnp.mean(v, axis=-1, keepdims=True)
    var = jnp.mean((v - mu) ** 2, axis=-1, keepdims=True)
    return (v - mu) * lax.rsqrt(var + EPS) * g + b


def _gelu_exact(v):
    # PyTorch F.gelu default (erf-based, exact)
    return 0.5 * v * (1.0 + lax.erf(v * (1.0 / math.sqrt(2.0))))


def _block_body(x_ref, vec_ref, w_ref):
    """Shared body. vec slab rows: [ln1_g, ln1_b, bqkv, bo, ln2_g, ln2_b, b1, b2]."""
    x = x_ref[...]                                                  # (BS, H)

    # ---- attention_norm ----
    xn = _layernorm(x, vec_ref[0:1, 0:H], vec_ref[1:2, 0:H])

    # ---- fused head-major QKV projection (1/sqrt(HD) folded into Q columns) ----
    qkv = jnp.dot(xn, w_ref[:, OFF_QKV:OFF_QKV + W3],
                  preferred_element_type=jnp.float32) + vec_ref[2:3, 0:W3]   # (BS, 3H)

    # ---- scores for every (batch, head), stacked along the sublane axis ----
    # TODO(synk): a single batched (B*NH, S, HD) contraction would need a sublane<->major
    # relayout inside the kernel; kept as a fully unrolled static loop for robust lowering.
    tiles = []
    for b in range(B):
        for h in range(NH):
            base = h * 3 * HD
            qh = qkv[b * S:(b + 1) * S, base:base + HD]             # (S, HD)
            kh = qkv[b * S:(b + 1) * S, base + HD:base + 2 * HD]
            # q @ k^T without materializing a transpose: contract last dims of both.
            tiles.append(lax.dot_general(qh, kh, (((1,), (1,)), ((), ())),
                                         preferred_element_type=jnp.float32))
    scores = jnp.concatenate(tiles, axis=0)                         # (B*NH*S, S)

    # ---- one batched softmax for all (b, h) ----
    scores = scores - jnp.max(scores, axis=-1, keepdims=True)
    p = jnp.exp(scores)
    inv = pl.reciprocal(jnp.sum(p, axis=-1, keepdims=True), approx=True)
    probs = p * inv                                                 # (B*NH*S, S)

    # ---- per-head context with Wo folded in (no ctx scratch round-trip) ----
    wo = w_ref[:, OFF_WO:OFF_WO + H]                                # (H, H)
    rows = []
    for b in range(B):
        acc = None
        for h in range(NH):
            base = h * 3 * HD
            vh = qkv[b * S:(b + 1) * S, base + 2 * HD:base + 3 * HD]        # (S, HD)
            pbh = probs[(b * NH + h) * S:(b * NH + h + 1) * S, :]           # (S, S)
            ctx = jnp.dot(pbh, vh, preferred_element_type=jnp.float32)      # (S, HD)
            contrib = jnp.dot(ctx, wo[h * HD:(h + 1) * HD, :],
                              preferred_element_type=jnp.float32)           # (S, H)
            acc = contrib if acc is None else acc + contrib
        rows.append(acc)
    attn_out = jnp.concatenate(rows, axis=0) + vec_ref[3:4, 0:H]    # (BS, H)
    x1 = attn_out + x

    # ---- ffn_norm + MLP(gelu) + residual ----
    xn2 = _layernorm(x1, vec_ref[4:5, 0:H], vec_ref[5:6, 0:H])
    hdn = jnp.dot(xn2, w_ref[:, OFF_W1:OFF_W1 + MLP],
                  preferred_element_type=jnp.float32) + vec_ref[6:7, 0:MLP]
    hdn = _gelu_exact(hdn)
    # fc2 via w2^T, contracting the last dim of both (no transpose in-kernel).
    out = lax.dot_general(hdn, w_ref[:, OFF_W2T:OFF_W2T + MLP],
                          (((1,), (1,)), ((), ())),
                          preferred_element_type=jnp.float32) + vec_ref[7:8, 0:H]
    return out + x1, probs


def block_kernel_vis(x_ref, vec_ref, w_ref, out_ref, attn_ref):
    out, probs = _block_body(x_ref, vec_ref, w_ref)
    out_ref[...] = out
    attn_ref[...] = probs            # single store; wrapper reshapes to (B, NH, S, S)


def block_kernel_novis(x_ref, vec_ref, w_ref, out_ref):
    out, _ = _block_body(x_ref, vec_ref, w_ref)
    out_ref[...] = out


def _pack_params(p):
    """One-time wrapper prep: head-major scale-folded QKV + 2 input slabs."""
    scale = 1.0 / math.sqrt(HD)
    wq_s = p["wq"] * scale
    bq_s = p["bq"] * scale
    wq_cols, bq_cols = [], []
    for h in range(NH):
        sl = slice(h * HD, (h + 1) * HD)
        wq_cols += [wq_s[:, sl], p["wk"][:, sl], p["wv"][:, sl]]
        bq_cols += [bq_s[:, sl], p["bk"][:, sl], p["bv"][:, sl]]
    wqkv = jnp.concatenate(wq_cols, axis=1)                          # (H, 3H) head-major
    bqkv = jnp.concatenate(bq_cols, axis=1)                          # (1, 3H) head-major

    def pad_row(v):
        return jnp.pad(v, ((0, 0), (0, W3 - v.shape[1])))

    vec = jnp.concatenate(
        [pad_row(p["ln1_g"]), pad_row(p["ln1_b"]), bqkv, pad_row(p["bo"]),
         pad_row(p["ln2_g"]), pad_row(p["ln2_b"]), pad_row(p["b1"]), pad_row(p["b2"])],
        axis=0)                                                      # (8, 3H)
    wslab = jnp.concatenate([wqkv, p["wo"], p["w1"], p["w2"].T], axis=1)  # (H, 256)
    return vec, wslab


def block_forward(x, params, vis=VIS):
    """x: (B, S, H) float32. params: dict of weights. Returns (out, weights or None)."""
    vec, wslab = _pack_params(params)
    x2 = x.reshape(BS, H)
    vmem = pl.BlockSpec(memory_space=pltpu.MemorySpace.VMEM)

    if vis:
        out2, probs = pl.pallas_call(
            block_kernel_vis,
            out_shape=[jax.ShapeDtypeStruct((BS, H), jnp.float32),
                       jax.ShapeDtypeStruct((BNH * S, S), jnp.float32)],
            in_specs=[vmem, vmem, vmem],
            out_specs=[vmem, vmem],
        )(x2, vec, wslab)
        weights = probs.reshape(B, NH, S, S)
    else:
        (out2,) = pl.pallas_call(
            block_kernel_novis,
            out_shape=[jax.ShapeDtypeStruct((BS, H), jnp.float32)],
            in_specs=[vmem, vmem, vmem],
            out_specs=[vmem],
        )(x2, vec, wslab)
        weights = None

    return out2.reshape(B, S, H), weights


def make_params(key):
    ks = jax.random.split(key, 12)
    sd = 0.02
    p = {
        "ln1_g": jnp.ones((1, H), jnp.float32),
        "ln1_b": jnp.zeros((1, H), jnp.float32),
        "ln2_g": jnp.ones((1, H), jnp.float32),
        "ln2_b": jnp.zeros((1, H), jnp.float32),
        "wq": sd * jax.random.normal(ks[0], (H, H), jnp.float32),
        "bq": sd * jax.random.normal(ks[1], (1, H), jnp.float32),
        "wk": sd * jax.random.normal(ks[2], (H, H), jnp.float32),
        "bk": sd * jax.random.normal(ks[3], (1, H), jnp.float32),
        "wv": sd * jax.random.normal(ks[4], (H, H), jnp.float32),
        "bv": sd * jax.random.normal(ks[5], (1, H), jnp.float32),
        "wo": sd * jax.random.normal(ks[6], (H, H), jnp.float32),
        "bo": sd * jax.random.normal(ks[7], (1, H), jnp.float32),
        "w1": sd * jax.random.normal(ks[8], (H, MLP), jnp.float32),
        "b1": sd * jax.random.normal(ks[9], (1, MLP), jnp.float32),
        "w2": sd * jax.random.normal(ks[10], (MLP, H), jnp.float32),
        "b2": sd * jax.random.normal(ks[11], (1, H), jnp.float32),
    }
    return p


def block_reference(x, p):
    """Pure-JAX reference of Block.forward (eval mode, dropout=identity)."""
    def ln(v, g, b):
        mu = v.mean(-1, keepdims=True)
        var = ((v - mu) ** 2).mean(-1, keepdims=True)
        return (v - mu) / jnp.sqrt(var + EPS) * g + b

    h0 = x
    xn = ln(x, p["ln1_g"][0], p["ln1_b"][0])
    q = xn @ p["wq"] + p["bq"][0]
    k = xn @ p["wk"] + p["bk"][0]
    v = xn @ p["wv"] + p["bv"][0]
    qh = q.reshape(B, S, NH, HD).transpose(0, 2, 1, 3)
    kh = k.reshape(B, S, NH, HD).transpose(0, 2, 1, 3)
    vh = v.reshape(B, S, NH, HD).transpose(0, 2, 1, 3)
    scores = jnp.einsum("bhqd,bhkd->bhqk", qh, kh) / math.sqrt(HD)
    probs = jax.nn.softmax(scores, axis=-1)
    ctx = jnp.einsum("bhqk,bhkd->bhqd", probs, vh).transpose(0, 2, 1, 3).reshape(B, S, H)
    attn_out = ctx @ p["wo"] + p["bo"][0]
    x1 = attn_out + h0
    xn2 = ln(x1, p["ln2_g"][0], p["ln2_b"][0])
    hd = xn2 @ p["w1"] + p["b1"][0]
    hd = 0.5 * hd * (1.0 + jax.lax.erf(hd / math.sqrt(2.0)))
    out = hd @ p["w2"] + p["b2"][0]
    return out + x1, probs


if __name__ == "__main__":
    key = jax.random.PRNGKey(0)
    kx, kp = jax.random.split(key)
    x = jax.random.normal(kx, (B, S, H), jnp.float32)
    params = make_params(kp)

    out, weights = block_forward(x, params, vis=True)
    out = jax.block_until_ready(out)
    weights = jax.block_until_ready(weights)

    # vis=False variant (no attention-probs output at all)
    out_nv, weights_nv = block_forward(x, params, vis=False)
    out_nv = jax.block_until_ready(out_nv)

    # sanity check against pure-JAX reference (loose tolerance for MXU / approx-reciprocal rounding)
    ref_out, ref_w = block_reference(x, params)
    assert out.shape == (B, S, H)
    assert jnp.allclose(out, ref_out, atol=2e-2, rtol=2e-2), "output mismatch"
    assert weights.shape == (B, NH, S, S)
    assert jnp.allclose(weights, ref_w, atol=2e-2, rtol=2e-2), "attn weights mismatch"
    assert weights_nv is None
    assert jnp.allclose(out_nv, out, atol=1e-6, rtol=1e-6), "vis=False output mismatch"

    print("KERNEL_OK")
</pallas_src>

<mosaic_0001>
module attributes {stable_mosaic.version = 11 : i64} {
  func.func @block_kernel_vis(%arg0: memref<16x32xf32, #tpu.memory_space<vmem>>, %arg1: memref<8x96xf32, #tpu.memory_space<vmem>>, %arg2: memref<32x256xf32, #tpu.memory_space<vmem>>, %arg3: memref<16x32xf32, #tpu.memory_space<vmem>>, %arg4: memref<64x8xf32, #tpu.memory_space<vmem>>) attributes {dimension_semantics = [], scalar_prefetch = 0 : i64, scratch_operands = 0 : i64, tpu.core_type = #tpu.core_type<tc>} {
    %c0 = arith.constant 0 : index
    %c0_0 = arith.constant 0 : index
    %0 = vector.load %arg0[%c0, %c0_0] : memref<16x32xf32, #tpu.memory_space<vmem>>, vector<16x32xf32>
    %c0_1 = arith.constant 0 : index
    %c0_2 = arith.constant 0 : index
    %1 = vector.load %arg1[%c0_1, %c0_2] : memref<8x96xf32, #tpu.memory_space<vmem>>, vector<1x32xf32>
    %c1 = arith.constant 1 : index
    %c0_3 = arith.constant 0 : index
    %2 = vector.load %arg1[%c1, %c0_3] : memref<8x96xf32, #tpu.memory_space<vmem>>, vector<1x32xf32>
    %cst = arith.constant dense<0.000000e+00> : vector<16xf32>
    %3 = vector.multi_reduction <add>, %0, %cst [1] : vector<16x32xf32> to vector<16xf32>
    %4 = vector.shape_cast %3 : vector<16xf32> to vector<16x1xf32>
    %cst_4 = arith.constant 3.200000e+01 : f32
    %5 = vector.broadcast %cst_4 : f32 to vector<16x1xf32>
    %6 = arith.divf %4, %5 : vector<16x1xf32>
    %7 = vector.broadcast %6 : vector<16x1xf32> to vector<16x32xf32>
    %8 = arith.subf %0, %7 : vector<16x32xf32>
    %9 = arith.mulf %8, %8 : vector<16x32xf32>
    %cst_5 = arith.constant dense<0.000000e+00> : vector<16xf32>
    %10 = vector.multi_reduction <add>, %9, %cst_5 [1] : vector<16x32xf32> to vector<16xf32>
    %11 = vector.shape_cast %10 : vector<16xf32> to vector<16x1xf32>
    %cst_6 = arith.constant 3.200000e+01 : f32
    %12 = vector.broadcast %cst_6 : f32 to vector<16x1xf32>
    %13 = arith.divf %11, %12 : vector<16x1xf32>
    %14 = vector.broadcast %6 : vector<16x1xf32> to vector<16x32xf32>
    %15 = arith.subf %0, %14 : vector<16x32xf32>
    %cst_7 = arith.constant 9.99999997E-7 : f32
    %16 = vector.broadcast %cst_7 : f32 to vector<16x1xf32>
    %17 = arith.addf %13, %16 : vector<16x1xf32>
    %18 = math.rsqrt %17 : vector<16x1xf32>
    %19 = vector.broadcast %18 : vector<16x1xf32> to vector<16x32xf32>
    %20 = arith.mulf %15, %19 : vector<16x32xf32>
    %21 = vector.broadcast %1 : vector<1x32xf32> to vector<16x32xf32>
    %22 = arith.mulf %20, %21 : vector<16x32xf32>
    %23 = vector.broadcast %2 : vector<1x32xf32> to vector<16x32xf32>
    %24 = arith.addf %22, %23 : vector<16x32xf32>
    %c0_8 = arith.constant 0 : index
    %c0_9 = arith.constant 0 : index
    %25 = vector.load %arg2[%c0_8, %c0_9] : memref<32x256xf32, #tpu.memory_space<vmem>>, vector<32x96xf32>
    %cst_10 = arith.constant dense<0.000000e+00> : vector<16x96xf32>
    %26 = tpu.matmul %24, %25, %cst_10 {dimension_numbers = #tpu.dot_dimension_numbers<[1], [0], [0], [1], [0, 0, 1, 1], [], []>} : vector<16x32xf32>, vector<32x96xf32>, vector<16x96xf32> -> vector<16x96xf32>
    %c2 = arith.constant 2 : index
    %c0_11 = arith.constant 0 : index
    %27 = vector.load %arg1[%c2, %c0_11] : memref<8x96xf32, #tpu.memory_space<vmem>>, vector<1x96xf32>
    %28 = vector.broadcast %27 : vector<1x96xf32> to vector<16x96xf32>
    %29 = arith.addf %26, %28 : vector<16x96xf32>
    %30 = vector.extract_strided_slice %29 {offsets = [0, 0], sizes = [8, 8], strides = [1, 1]} : vector<16x96xf32> to vector<8x8xf32>
    %31 = vector.extract_strided_slice %29 {offsets = [0, 8], sizes = [8, 8], strides = [1, 1]} : vector<16x96xf32> to vector<8x8xf32>
    %cst_12 = arith.constant dense<0.000000e+00> : vector<8x8xf32>
    %32 = tpu.matmul %30, %31, %cst_12 {dimension_numbers = #tpu.dot_dimension_numbers<[1], [1], [0], [0], [0, 0, 1, 0], [], []>} : vector<8x8xf32>, vector<8x8xf32>, vector<8x8xf32> -> vector<8x8xf32>
    %33 = vector.extract_strided_slice %29 {offsets = [0, 24], sizes = [8, 8], strides = [1, 1]} : vector<16x96xf32> to vector<8x8xf32>
    %34 = vector.extract_strided_slice %29 {offsets = [0, 32], sizes = [8, 8], strides = [1, 1]} : vector<16x96xf32> to vector<8x8xf32>
    %cst_13 = arith.constant dense<0.000000e+00> : vector<8x8xf32>
    %35 = tpu.matmul %33, %34, %cst_13 {dimension_numbers = #tpu.dot_dimension_numbers<[1], [1], [0], [0], [0, 0, 1, 0], [], []>} : vector<8x8xf32>, vector<8x8xf32>, vector<8x8xf32> -> vector<8x8xf32>
    %36 = vector.extract_strided_slice %29 {offsets = [0, 48], sizes = [8, 8], strides = [1, 1]} : vector<16x96xf32> to vector<8x8xf32>
    %37 = vector.extract_strided_slice %29 {offsets = [0, 56], sizes = [8, 8], strides = [1, 1]} : vector<16x96xf32> to vector<8x8xf32>
    %cst_14 = arith.constant dense<0.000000e+00> : vector<8x8xf32>
    %38 = tpu.matmul %36, %37, %cst_14 {dimension_numbers = #tpu.dot_dimension_numbers<[1], [1], [0], [0], [0, 0, 1, 0], [], []>} : vector<8x8xf32>, vector<8x8xf32>, vector<8x8xf32> -> vector<8x8xf32>
    %39 = vector.extract_strided_slice %29 {offsets = [0, 72], sizes = [8, 8], strides = [1, 1]} : vector<16x96xf32> to vector<8x8xf32>
    %40 = vector.extract_strided_slice %29 {offsets = [0, 80], sizes = [8, 8], strides = [1, 1]} : vector<16x96xf32> to vector<8x8xf32>
    %cst_15 = arith.constant dense<0.000000e+00> : vector<8x8xf32>
    %41 = tpu.matmul %39, %40, %cst_15 {dimension_numbers = #tpu.dot_dimension_numbers<[1], [1], [0], [0], [0, 0, 1, 0], [], []>} : vector<8x8xf32>, vector<8x8xf32>, vector<8x8xf32> -> vector<8x8xf32>
    %42 = vector.extract_strided_slice %29 {offsets = [8, 0], sizes = [8, 8], strides = [1, 1]} : vector<16x96xf32> to vector<8x8xf32>
    %43 = vector.extract_strided_slice %29 {offsets = [8, 8], sizes = [8, 8], strides = [1, 1]} : vector<16x96xf32> to vector<8x8xf32>
    %cst_16 = arith.constant dense<0.000000e+00> : vector<8x8xf32>
    %44 = tpu.matmul %42, %43, %cst_16 {dimension_numbers = #tpu.dot_dimension_numbers<[1], [1], [0], [0], [0, 0, 1, 0], [], []>} : vector<8x8xf32>, vector<8x8xf32>, vector<8x8xf32> -> vector<8x8xf32>
    %45 = vector.extract_strided_slice %29 {offsets = [8, 24], sizes = [8, 8], strides = [1, 1]} : vector<16x96xf32> to vector<8x8xf32>
    %46 = vector.extract_strided_slice %29 {offsets = [8, 32], sizes = [8, 8], strides = [1, 1]} : vector<16x96xf32> to vector<8x8xf32>
    %cst_17 = arith.constant dense<0.000000e+00> : vector<8x8xf32>
    %47 = tpu.matmul %45, %46, %cst_17 {dimension_numbers = #tpu.dot_dimension_numbers<[1], [1], [0], [0], [0, 0, 1, 0], [], []>} : vector<8x8xf32>, vector<8x8xf32>, vector<8x8xf32> -> vector<8x8xf32>
    %48 = vector.extract_strided_slice %29 {offsets = [8, 48], sizes = [8, 8], strides = [1, 1]} : vector<16x96xf32> to vector<8x8xf32>
    %49 = vector.extract_strided_slice %29 {offsets = [8, 56], sizes = [8, 8], strides = [1, 1]} : vector<16x96xf32> to vector<8x8xf32>
    %cst_18 = arith.constant dense<0.000000e+00> : vector<8x8xf32>
    %50 = tpu.matmul %48, %49, %cst_18 {dimension_numbers = #tpu.dot_dimension_numbers<[1], [1], [0], [0], [0, 0, 1, 0], [], []>} : vector<8x8xf32>, vector<8x8xf32>, vector<8x8xf32> -> vector<8x8xf32>
    %51 = vector.extract_strided_slice %29 {offsets = [8, 72], sizes = [8, 8], strides = [1, 1]} : vector<16x96xf32> to vector<8x8xf32>
    %52 = vector.extract_strided_slice %29 {offsets = [8, 80], sizes = [8, 8], strides = [1, 1]} : vector<16x96xf32> to vector<8x8xf32>
    %cst_19 = arith.constant dense<0.000000e+00> : vector<8x8xf32>
    %53 = tpu.matmul %51, %52, %cst_19 {dimension_numbers = #tpu.dot_dimension_numbers<[1], [1], [0], [0], [0, 0, 1, 0], [], []>} : vector<8x8xf32>, vector<8x8xf32>, vector<8x8xf32> -> vector<8x8xf32>
    %54 = tpu.concatenate %32, %35, %38, %41, %44, %47, %50, %53 in 0 : vector<8x8xf32>, vector<8x8xf32>, vector<8x8xf32>, vector<8x8xf32>, vector<8x8xf32>, vector<8x8xf32>, vector<8x8xf32>, vector<8x8xf32> -> vector<64x8xf32>
    %cst_20 = arith.constant dense<0xFF800000> : vector<64xf32>
    %55 = vector.multi_reduction <maximumf>, %54, %cst_20 [1] : vector<64x8xf32> to vector<64xf32>
    %56 = vector.shape_cast %55 : vector<64xf32> to vector<64x1xf32>
    %57 = vector.broadcast %56 : vector<64x1xf32> to vector<64x8xf32>
    %58 = arith.subf %54, %57 : vector<64x8xf32>
    %59 = math.exp %58 : vector<64x8xf32>
    %cst_21 = arith.constant dense<0.000000e+00> : vector<64xf32>
    %60 = vector.multi_reduction <add>, %59, %cst_21 [1] : vector<64x8xf32> to vector<64xf32>
    %61 = vector.shape_cast %60 : vector<64xf32> to vector<64x1xf32>
    %62 = tpu.reciprocal %61 {approx = true} : vector<64x1xf32> -> vector<64x1xf32>
    %63 = vector.broadcast %62 : vector<64x1xf32> to vector<64x8xf32>
    %64 = arith.mulf %59, %63 : vector<64x8xf32>
    %c0_22 = arith.constant 0 : index
    %c96 = arith.constant 96 : index
    %65 = vector.load %arg2[%c0_22, %c96] : memref<32x256xf32, #tpu.memory_space<vmem>>, vector<32x32xf32>
    %66 = vector.extract_strided_slice %29 {offsets = [0, 16], sizes = [8, 8], strides = [1, 1]} : vector<16x96xf32> to vector<8x8xf32>
    %67 = vector.extract_strided_slice %64 {offsets = [0, 0], sizes = [8, 8], strides = [1, 1]} : vector<64x8xf32> to vector<8x8xf32>
    %cst_23 = arith.constant dense<0.000000e+00> : vector<8x8xf32>
    %68 = tpu.matmul %67, %66, %cst_23 {dimension_numbers = #tpu.dot_dimension_numbers<[1], [0], [0], [1], [0, 0, 1, 1], [], []>} : vector<8x8xf32>, vector<8x8xf32>, vector<8x8xf32> -> vector<8x8xf32>
    %69 = vector.extract_strided_slice %65 {offsets = [0, 0], sizes = [8, 32], strides = [1, 1]} : vector<32x32xf32> to vector<8x32xf32>
    %cst_24 = arith.constant dense<0.000000e+00> : vector<8x32xf32>
    %70 = tpu.matmul %68, %69, %cst_24 {dimension_numbers = #tpu.dot_dimension_numbers<[1], [0], [0], [1], [0, 0, 1, 1], [], []>} : vector<8x8xf32>, vector<8x32xf32>, vector<8x32xf32> -> vector<8x32xf32>
    %71 = vector.extract_strided_slice %29 {offsets = [0, 40], sizes = [8, 8], strides = [1, 1]} : vector<16x96xf32> to vector<8x8xf32>
    %72 = vector.extract_strided_slice %64 {offsets = [8, 0], sizes = [8, 8], strides = [1, 1]} : vector<64x8xf32> to vector<8x8xf32>
    %cst_25 = arith.constant dense<0.000000e+00> : vector<8x8xf32>
    %73 = tpu.matmul %72, %71, %cst_25 {dimension_numbers = #tpu.dot_dimension_numbers<[1], [0], [0], [1], [0, 0, 1, 1], [], []>} : vector<8x8xf32>, vector<8x8xf32>, vector<8x8xf32> -> vector<8x8xf32>
    %74 = vector.extract_strided_slice %65 {offsets = [8, 0], sizes = [8, 32], strides = [1, 1]} : vector<32x32xf32> to vector<8x32xf32>
    %cst_26 = arith.constant dense<0.000000e+00> : vector<8x32xf32>
    %75 = tpu.matmul %73, %74, %cst_26 {dimension_numbers = #tpu.dot_dimension_numbers<[1], [0], [0], [1], [0, 0, 1, 1], [], []>} : vector<8x8xf32>, vector<8x32xf32>, vector<8x32xf32> -> vector<8x32xf32>
    %76 = arith.addf %70, %75 : vector<8x32xf32>
    %77 = vector.extract_strided_slice %29 {offsets = [0, 64], sizes = [8, 8], strides = [1, 1]} : vector<16x96xf32> to vector<8x8xf32>
    %78 = vector.extract_strided_slice %64 {offsets = [16, 0], sizes = [8, 8], strides = [1, 1]} : vector<64x8xf32> to vector<8x8xf32>
    %cst_27 = arith.constant dense<0.000000e+00> : vector<8x8xf32>
    %79 = tpu.matmul %78, %77, %cst_27 {dimension_numbers = #tpu.dot_dimension_numbers<[1], [0], [0], [1], [0, 0, 1, 1], [], []>} : vector<8x8xf32>, vector<8x8xf32>, vector<8x8xf32> -> vector<8x8xf32>
    %80 = vector.extract_strided_slice %65 {offsets = [16, 0], sizes = [8, 32], strides = [1, 1]} : vector<32x32xf32> to vector<8x32xf32>
    %cst_28 = arith.constant dense<0.000000e+00> : vector<8x32xf32>
    %81 = tpu.matmul %79, %80, %cst_28 {dimension_numbers = #tpu.dot_dimension_numbers<[1], [0], [0], [1], [0, 0, 1, 1], [], []>} : vector<8x8xf32>, vector<8x32xf32>, vector<8x32xf32> -> vector<8x32xf32>
    %82 = arith.addf %76, %81 : vector<8x32xf32>
    %83 = vector.extract_strided_slice %29 {offsets = [0, 88], sizes = [8, 8], strides = [1, 1]} : vector<16x96xf32> to vector<8x8xf32>
    %84 = vector.extract_strided_slice %64 {offsets = [24, 0], sizes = [8, 8], strides = [1, 1]} : vector<64x8xf32> to vector<8x8xf32>
    %cst_29 = arith.constant dense<0.000000e+00> : vector<8x8xf32>
    %85 = tpu.matmul %84, %83, %cst_29 {dimension_numbers = #tpu.dot_dimension_numbers<[1], [0], [0], [1], [0, 0, 1, 1], [], []>} : vector<8x8xf32>, vector<8x8xf32>, vector<8x8xf32> -> vector<8x8xf32>
    %86 = vector.extract_strided_slice %65 {offsets = [24, 0], sizes = [8, 32], strides = [1, 1]} : vector<32x32xf32> to vector<8x32xf32>
    %cst_30 = arith.constant dense<0.000000e+00> : vector<8x32xf32>
    %87 = tpu.matmul %85, %86, %cst_30 {dimension_numbers = #tpu.dot_dimension_numbers<[1], [0], [0], [1], [0, 0, 1, 1], [], []>} : vector<8x8xf32>, vector<8x32xf32>, vector<8x32xf32> -> vector<8x32xf32>
    %88 = arith.addf %82, %87 : vector<8x32xf32>
    %89 = vector.extract_strided_slice %29 {offsets = [8, 16], sizes = [8, 8], strides = [1, 1]} : vector<16x96xf32> to vector<8x8xf32>
    %90 = vector.extract_strided_slice %64 {offsets = [32, 0], sizes = [8, 8], strides = [1, 1]} : vector<64x8xf32> to vector<8x8xf32>
    %cst_31 = arith.constant dense<0.000000e+00> : vector<8x8xf32>
    %91 = tpu.matmul %90, %89, %cst_31 {dimension_numbers = #tpu.dot_dimension_numbers<[1], [0], [0], [1], [0, 0, 1, 1], [], []>} : vector<8x8xf32>, vector<8x8xf32>, vector<8x8xf32> -> vector<8x8xf32>
    %92 = vector.extract_strided_slice %65 {offsets = [0, 0], sizes = [8, 32], strides = [1, 1]} : vector<32x32xf32> to vector<8x32xf32>
    %cst_32 = arith.constant dense<0.000000e+00> : vector<8x32xf32>
    %93 = tpu.matmul %91, %92, %cst_32 {dimension_numbers = #tpu.dot_dimension_numbers<[1], [0], [0], [1], [0, 0, 1, 1], [], []>} : vector<8x8xf32>, vector<8x32xf32>, vector<8x32xf32> -> vector<8x32xf32>
    %94 = vector.extract_strided_slice %29 {offsets = [8, 40], sizes = [8, 8], strides = [1, 1]} : vector<16x96xf32> to vector<8x8xf32>
    %95 = vector.extract_strided_slice %64 {offsets = [40, 0], sizes = [8, 8], strides = [1, 1]} : vector<64x8xf32> to vector<8x8xf32>
    %cst_33 = arith.constant dense<0.000000e+00> : vector<8x8xf32>
    %96 = tpu.matmul %95, %94, %cst_33 {dimension_numbers = #tpu.dot_dimension_numbers<[1], [0], [0], [1], [0, 0, 1, 1], [], []>} : vector<8x8xf32>, vector<8x8xf32>, vector<8x8xf32> -> vector<8x8xf32>
    %97 = vector.extract_strided_slice %65 {offsets = [8, 0], sizes = [8, 32], strides = [1, 1]} : vector<32x32xf32> to vector<8x32xf32>
    %cst_34 = arith.constant dense<0.000000e+00> : vector<8x32xf32>
    %98 = tpu.matmul %96, %97, %cst_34 {dimension_numbers = #tpu.dot_dimension_numbers<[1], [0], [0], [1], [0, 0, 1, 1], [], []>} : vector<8x8xf32>, vector<8x32xf32>, vector<8x32xf32> -> vector<8x32xf32>
    %99 = arith.addf %93, %98 : vector<8x32xf32>
    %100 = vector.extract_strided_slice %29 {offsets = [8, 64], sizes = [8, 8], strides = [1, 1]} : vector<16x96xf32> to vector<8x8xf32>
    %101 = vector.extract_strided_slice %64 {offsets = [48, 0], sizes = [8, 8], strides = [1, 1]} : vector<64x8xf32> to vector<8x8xf32>
    %cst_35 = arith.constant dense<0.000000e+00> : vector<8x8xf32>
    %102 = tpu.matmul %101, %100, %cst_35 {dimension_numbers = #tpu.dot_dimension_numbers<[1], [0], [0], [1], [0, 0, 1, 1], [], []>} : vector<8x8xf32>, vector<8x8xf32>, vector<8x8xf32> -> vector<8x8xf32>
    %103 = vector.extract_strided_slice %65 {offsets = [16, 0], sizes = [8, 32], strides = [1, 1]} : vector<32x32xf32> to vector<8x32xf32>
    %cst_36 = arith.constant dense<0.000000e+00> : vector<8x32xf32>
    %104 = tpu.matmul %102, %103, %cst_36 {dimension_numbers = #tpu.dot_dimension_numbers<[1], [0], [0], [1], [0, 0, 1, 1], [], []>} : vector<8x8xf32>, vector<8x32xf32>, vector<8x32xf32> -> vector<8x32xf32>
    %105 = arith.addf %99, %104 : vector<8x32xf32>
    %106 = vector.extract_strided_slice %29 {offsets = [8, 88], sizes = [8, 8], strides = [1, 1]} : vector<16x96xf32> to vector<8x8xf32>
    %107 = vector.extract_strided_slice %64 {offsets = [56, 0], sizes = [8, 8], strides = [1, 1]} : vector<64x8xf32> to vector<8x8xf32>
    %cst_37 = arith.constant dense<0.000000e+00> : vector<8x8xf32>
    %108 = tpu.matmul %107, %106, %cst_37 {dimension_numbers = #tpu.dot_dimension_numbers<[1], [0], [0], [1], [0, 0, 1, 1], [], []>} : vector<8x8xf32>, vector<8x8xf32>, vector<8x8xf32> -> vector<8x8xf32>
    %109 = vector.extract_strided_slice %65 {offsets = [24, 0], sizes = [8, 32], strides = [1, 1]} : vector<32x32xf32> to vector<8x32xf32>
    %cst_38 = arith.constant dense<0.000000e+00> : vector<8x32xf32>
    %110 = tpu.matmul %108, %109, %cst_38 {dimension_numbers = #tpu.dot_dimension_numbers<[1], [0], [0], [1], [0, 0, 1, 1], [], []>} : vector<8x8xf32>, vector<8x32xf32>, vector<8x32xf32> -> vector<8x32xf32>
    %111 = arith.addf %105, %110 : vector<8x32xf32>
    %112 = tpu.concatenate %88, %111 in 0 : vector<8x32xf32>, vector<8x32xf32> -> vector<16x32xf32>
    %c3 = arith.constant 3 : index
    %c0_39 = arith.constant 0 : index
    %113 = vector.load %arg1[%c3, %c0_39] : memref<8x96xf32, #tpu.memory_space<vmem>>, vector<1x32xf32>
    %114 = vector.broadcast %113 : vector<1x32xf32> to vector<16x32xf32>
    %115 = arith.addf %112, %114 : vector<16x32xf32>
    %116 = arith.addf %115, %0 : vector<16x32xf32>
    %c4 = arith.constant 4 : index
    %c0_40 = arith.constant 0 : index
    %117 = vector.load %arg1[%c4, %c0_40] : memref<8x96xf32, #tpu.memory_space<vmem>>, vector<1x32xf32>
    %c5 = arith.constant 5 : index
    %c0_41 = arith.constant 0 : index
    %118 = vector.load %arg1[%c5, %c0_41] : memref<8x96xf32, #tpu.memory_space<vmem>>, vector<1x32xf32>
    %cst_42 = arith.constant dense<0.000000e+00> : vector<16xf32>
    %119 = vector.multi_reduction <add>, %116, %cst_42 [1] : vector<16x32xf32> to vector<16xf32>
    %120 = vector.shape_cast %119 : vector<16xf32> to vector<16x1xf32>
    %cst_43 = arith.constant 3.200000e+01 : f32
    %121 = vector.broadcast %cst_43 : f32 to vector<16x1xf32>
    %122 = arith.divf %120, %121 : vector<16x1xf32>
    %123 = vector.broadcast %122 : vector<16x1xf32> to vector<16x32xf32>
    %124 = arith.subf %116, %123 : vector<16x32xf32>
    %125 = arith.mulf %124, %124 : vector<16x32xf32>
    %cst_44 = arith.constant dense<0.000000e+00> : vector<16xf32>
    %126 = vector.multi_reduction <add>, %125, %cst_44 [1] : vector<16x32xf32> to vector<16xf32>
    %127 = vector.shape_cast %126 : vector<16xf32> to vector<16x1xf32>
    %cst_45 = arith.constant 3.200000e+01 : f32
    %128 = vector.broadcast %cst_45 : f32 to vector<16x1xf32>
    %129 = arith.divf %127, %128 : vector<16x1xf32>
    %130 = vector.broadcast %122 : vector<16x1xf32> to vector<16x32xf32>
    %131 = arith.subf %116, %130 : vector<16x32xf32>
    %cst_46 = arith.constant 9.99999997E-7 : f32
    %132 = vector.broadcast %cst_46 : f32 to vector<16x1xf32>
    %133 = arith.addf %129, %132 : vector<16x1xf32>
    %134 = math.rsqrt %133 : vector<16x1xf32>
    %135 = vector.broadcast %134 : vector<16x1xf32> to vector<16x32xf32>
    %136 = arith.mulf %131, %135 : vector<16x32xf32>
    %137 = vector.broadcast %117 : vector<1x32xf32> to vector<16x32xf32>
    %138 = arith.mulf %136, %137 : vector<16x32xf32>
    %139 = vector.broadcast %118 : vector<1x32xf32> to vector<16x32xf32>
    %140 = arith.addf %138, %139 : vector<16x32xf32>
    %c0_47 = arith.constant 0 : index
    %c128 = arith.constant 128 : index
    %141 = vector.load %arg2[%c0_47, %c128] : memref<32x256xf32, #tpu.memory_space<vmem>>, vector<32x64xf32>
    %cst_48 = arith.constant dense<0.000000e+00> : vector<16x64xf32>
    %142 = tpu.matmul %140, %141, %cst_48 {dimension_numbers = #tpu.dot_dimension_numbers<[1], [0], [0], [1], [0, 0, 1, 1], [], []>} : vector<16x32xf32>, vector<32x64xf32>, vector<16x64xf32> -> vector<16x64xf32>
    %c6 = arith.constant 6 : index
    %c0_49 = arith.constant 0 : index
    %143 = vector.load %arg1[%c6, %c0_49] : memref<8x96xf32, #tpu.memory_space<vmem>>, vector<1x64xf32>
    %144 = vector.broadcast %143 : vector<1x64xf32> to vector<16x64xf32>
    %145 = arith.addf %142, %144 : vector<16x64xf32>
    %cst_50 = arith.constant 5.000000e-01 : f32
    %146 = vector.broadcast %cst_50 : f32 to vector<16x64xf32>
    %147 = arith.mulf %146, %145 : vector<16x64xf32>
    %cst_51 = arith.constant 0.707106769 : f32
    %148 = vector.broadcast %cst_51 : f32 to vector<16x64xf32>
    %149 = arith.mulf %145, %148 : vector<16x64xf32>
    %150 = math.erf %149 : vector<16x64xf32>
    %cst_52 = arith.constant 1.000000e+00 : f32
    %151 = vector.broadcast %cst_52 : f32 to vector<16x64xf32>
    %152 = arith.addf %151, %150 : vector<16x64xf32>
    %153 = arith.mulf %147, %152 : vector<16x64xf32>
    %c0_53 = arith.constant 0 : index
    %c192 = arith.constant 192 : index
    %154 = vector.load %arg2[%c0_53, %c192] : memref<32x256xf32, #tpu.memory_space<vmem>>, vector<32x64xf32>
    %cst_54 = arith.constant dense<0.000000e+00> : vector<16x32xf32>
    %155 = tpu.matmul %153, %154, %cst_54 {dimension_numbers = #tpu.dot_dimension_numbers<[1], [1], [0], [0], [0, 0, 1, 0], [], []>} : vector<16x64xf32>, vector<32x64xf32>, vector<16x32xf32> -> vector<16x32xf32>
    %c7 = arith.constant 7 : index
    %c0_55 = arith.constant 0 : index
    %156 = vector.load %arg1[%c7, %c0_55] : memref<8x96xf32, #tpu.memory_space<vmem>>, vector<1x32xf32>
    %157 = vector.broadcast %156 : vector<1x32xf32> to vector<16x32xf32>
    %158 = arith.addf %155, %157 : vector<16x32xf32>
    %159 = arith.addf %158, %116 : vector<16x32xf32>
    %c0_56 = arith.constant 0 : index
    %c0_57 = arith.constant 0 : index
    %160 = vector.load %arg3[%c0_56, %c0_57] : memref<16x32xf32, #tpu.memory_space<vmem>>, vector<16x32xf32>
    tpu.vector_store %arg3[%c0_56, %c0_57], %159 {strides = array<i32>} : memref<16x32xf32, #tpu.memory_space<vmem>>, vector<16x32xf32>,
    %c0_58 = arith.constant 0 : index
    %c0_59 = arith.constant 0 : index
    %161 = vector.load %arg4[%c0_58, %c0_59] : memref<64x8xf32, #tpu.memory_space<vmem>>, vector<64x8xf32>
    tpu.vector_store %arg4[%c0_58, %c0_59], %64 {strides = array<i32>} : memref<64x8xf32, #tpu.memory_space<vmem>>, vector<64x8xf32>,
    return
  }
}

</mosaic_0001>

<llo_original>
// kernel: tpu_custom_call.1
$region0: #{tpu_custom_call.1}
  #allocation0 [shape = 'u32[]', space=smem, size = 0x4, offset = 0x4, fixed_abs, tag = 'smem constant byte address 0x4 - core index']
  #allocation1 [shape = 'u32[144,128]{1,0:T(1,128)}', space=vmem, size = 0x12000, scoped, tag = 'internal scratch']
  %s0 = inlined_call_operand.hbm [shape: f32[16,32], index: 0, kind: input, shape index: {}]
  %s1 = inlined_call_operand.hbm [shape: f32[8,96], index: 1, kind: input, shape index: {}]
  %s2 = inlined_call_operand.hbm [shape: f32[32,256], index: 2, kind: input, shape index: {}]
  %s3 = inlined_call_operand.hbm [shape: f32[16,32], index: 3, kind: output, shape index: {0}]
  %s4 = inlined_call_operand.vmem [shape: f32[64,8], index: 4, kind: output, shape index: {1}]
  %5 = xla_tuple %s3, %s4
  %s6 = sld [smem:[#allocation0]]
  $region42: #{tpu_custom_call.1} parent=0
    _
  %s8 = ssub.s32 1, %s6
  %s9 = scalar_select 0, %s8, %s6
  $region1: #{tpu_custom_call.1} parent=0
    #allocation2 [shape = 'u8[8192]{0}', space=vmem, size = 0x2000, scoped, tag = 'input window, operand 0, single buffered']
    #allocation3 [shape = 's32[1]{0}', space=sflag, size = 0x4, scoped, tag = 'scoped memory for tpu_custom_call.1']
    #allocation4 [shape = 's32[1]{0}', space=sflag, size = 0x4, scoped, tag = 'scoped memory for tpu_custom_call.1']
    #allocation5 [shape = 'u8[4096]{0}', space=vmem, size = 0x1000, scoped, tag = 'input window, operand 1, single buffered']
    #allocation6 [shape = 's32[1]{0}', space=sflag, size = 0x4, scoped, tag = 'scoped memory for tpu_custom_call.1']
    #allocation7 [shape = 'u8[32768]{0}', space=vmem, size = 0x8000, scoped, tag = 'input window, operand 2, single buffered']
    #allocation8 [shape = 'u8[8192]{0}', space=vmem, size = 0x2000, scoped, tag = 'output window, operand 0, single buffered']
    %10 = vsyncpa [#allocation3], 0
    %11 = vsyncpa [#allocation6], 0
    %12 = vsyncpa [#allocation4], 0
    // Predicated region
    $region2: #{tpu_custom_call.1} parent=1 // pred_check
      _
    $region3: #{tpu_custom_call.1} parent=1 // pred_check_branch
      %14 = sbr.rel (0) target = $region5
    $region4: #{tpu_custom_call.1} parent=1 // pred_region
      %s16 = ssub.s32 256, 256
      %17 = vsyncadd [#allocation3], %s16
      %s18 = sshll.u32 [#allocation2], 4
      %s19 = int_to_ptr.vmem [resolvable:$true] %s18
      %24 = dma.hbm_to_vmem [thread:$0]  %s0, 256, %s19, [#allocation3], 128, 128, 8
    $region5: #{tpu_custom_call.1} parent=1 // pred_fallthru
      _
    // Predicated region
    $region6: #{tpu_custom_call.1} parent=1 // pred_check
      _
    $region7: #{tpu_custom_call.1} parent=1 // pred_check_branch
      %26 = sbr.rel (0) target = $region9
    $region8: #{tpu_custom_call.1} parent=1 // pred_region
      %s28 = ssub.s32 128, 128
      %29 = vsyncadd [#allocation6], %s28
      %s31 = sshll.u32 [#allocation5], 4
      %s32 = int_to_ptr.vmem [resolvable:$true] %s31
      %34 = dma.hbm_to_vmem [thread:$0]  %s1, 128, %s32, [#allocation6]
    $region9: #{tpu_custom_call.1} parent=1 // pred_fallthru
      _
    // Predicated region
    $region10: #{tpu_custom_call.1} parent=1 // pred_check
      _
    $region11: #{tpu_custom_call.1} parent=1 // pred_check_branch
      %36 = sbr.rel (0) target = $region13
    $region12: #{tpu_custom_call.1} parent=1 // pred_region
      %s38 = ssub.s32 1024, 1024
      %39 = vsyncadd [#allocation6], %s38
      %s40 = sshll.u32 [#allocation7], 4
      %s41 = int_to_ptr.vmem [resolvable:$true] %s40
      %46 = dma.hbm_to_vmem [thread:$0]  %s2, 1024, %s41, [#allocation6], 256, 256, 16
    $region13: #{tpu_custom_call.1} parent=1 // pred_fallthru
      _
    // Predicated region
    $region14: #{tpu_custom_call.1} parent=1 // pred_check
      _
    $region15: #{tpu_custom_call.1} parent=1 // pred_check_branch
      %48 = sbr.rel (0) target = $region17
    $region16: #{tpu_custom_call.1} parent=1 // pred_region
      %49 = dma.done [#allocation3], 256
    $region17: #{tpu_custom_call.1} parent=1 // pred_fallthru
      _
    // Predicated region
    $region18: #{tpu_custom_call.1} parent=1 // pred_check
      _
    $region19: #{tpu_custom_call.1} parent=1 // pred_check_branch
      %51 = sbr.rel (0) target = $region21
    $region20: #{tpu_custom_call.1} parent=1 // pred_region
      %52 = dma.done [#allocation6], 128
    $region21: #{tpu_custom_call.1} parent=1 // pred_fallthru
      _
    // Predicated region
    $region22: #{tpu_custom_call.1} parent=1 // pred_check
      _
    $region23: #{tpu_custom_call.1} parent=1 // pred_check_branch
      %54 = sbr.rel (0) target = $region25
    $region24: #{tpu_custom_call.1} parent=1 // pred_region
      %55 = dma.done [#allocation6], 1024
    $region25: #{tpu_custom_call.1} parent=1 // pred_fallthru
      _
    %v56 = vld [vmem:[#allocation2] sm:$0xff]
    %v57 = vld [vmem:[#allocation2 + $0x8] sm:$0xff]
    %v58 = vld [vmem:[#allocation5] sm:$0x1]
    %v59 = vld [vmem:[#allocation5 + $0x1] sm:$0x1]
    %vm60 = vcmask 261120
    %v61 = vsel %vm60, %v56, 0.0
    %62 = vadd.xlane.f32.xlu0 %v61
    %v63 = vpop.xlane.xlu0 %62
    %v64 = vsel %vm60, %v57, 0.0
    %65 = vadd.xlane.f32.xlu0 %v64
    %v66 = vpop.xlane.xlu0 %65
    %v67 = vrcp.pop 32.0
    %v68 = vmul.f32 %v63, %v67
    %v69 = vmul.f32 %v66, %v67
    %v70 = vsub.f32 %v56, %v68
    %v71 = vsub.f32 %v57, %v69
    %v72 = vmul.f32 %v70, %v70
    %v73 = vmul.f32 %v71, %v71
    %v74 = vsel %vm60, %v72, 0.0
    %75 = vadd.xlane.f32.xlu0 %v74
    %v76 = vpop.xlane.xlu0 %75
    %v77 = vsel %vm60, %v73, 0.0
    %78 = vadd.xlane.f32.xlu0 %v77
    %v79 = vpop.xlane.xlu0 %78
    %v80 = vmul.f32 %v76, %v67
    %v81 = vmul.f32 %v79, %v67
    %v82 = vadd.f32 %v80, 1e-06
    %v83 = vadd.f32 %v81, 1e-06
    %v84 = vrsqrt.pop %v82
    %v85 = vrsqrt.pop %v83
    %v86 = vmul.f32 %v70, %v84
    %v87 = vmul.f32 %v71, %v85
    %v88 = vlaneseq
    %v89 = vshrl.u32 %v88, 7
    %v90 = vsub.s32 0, %v89
    %v91 = vrot.slane %v58, %v90
    %v92 = vmul.f32 %v86, %v91
    %v93 = vmul.f32 %v87, %v91
    %v94 = vlaneseq
    %v95 = vshrl.u32 %v94, 7
    %v96 = vsub.s32 0, %v95
    %v97 = vrot.slane %v59, %v96
    %v98 = vadd.f32 %v92, %v97
    %v99 = vadd.f32 %v93, %v97
    %v100 = vld [vmem:[#allocation7] sm:$0xff]
    %v101 = vld [vmem:[#allocation7 + $0x10] sm:$0xff]
    %v102 = vld [vmem:[#allocation7 + $0x20] sm:$0xff]
    %v103 = vld [vmem:[#allocation7 + $0x30] sm:$0xff]
    %v104 = vld [vmem:[#allocation5 + $0x2] sm:$0x1]
    %v105 = vlaneseq
    %v106 = vshrl.u32 %v105, 7
    %v107 = vsub.s32 0, %v106
    %v108 = vrot.slane %v104, %v107
    %v110 = vsel %vm60, %v98, 0
    %v113 = vsel %vm60, %v99, 0
    %115 = vmatprep.subr.mxu0 0.0
    %116 = vmatpush1.msra.mxu0 %v100
    %117 = vmatprep.subr.mxu0 0.0
    %118 = vmatpush1.msra.mxu0 %v101
    %119 = vmatprep.subr.mxu0 0.0
    %120 = vmatpush1.msra.mxu0 %v102
    %121 = vmatprep.subr.mxu0 0.0
    %122 = vmatpush1.msra.mxu0 %v103
    %123 = vmatprep.subr.mxu0 0.0
    %124 = vmatpush1.msra.mxu0 0.0
    %125 = vmatprep.subr.mxu0 0.0
    %126 = vmatpush1.msra.mxu0 0.0
    %127 = vmatprep.subr.mxu0 0.0
    %128 = vmatpush1.msra.mxu0 0.0
    %129 = vmatprep.subr.mxu0 0.0
    %130 = vmatpush1.msra.mxu0 0.0
    %131 = vmatprep.subr.mxu0 0.0
    %132 = vmatpush1.msra.mxu0 0.0
    %133 = vmatprep.subr.mxu0 0.0
    %134 = vmatpush1.msra.mxu0 0.0
    %135 = vmatprep.subr.mxu0 0.0
    %136 = vmatpush1.msra.mxu0 0.0
    %137 = vmatprep.subr.mxu0 0.0
    %138 = vmatpush1.msra.mxu0 0.0
    %139 = vmatprep.subr.mxu0 0.0
    %140 = vmatpush1.msra.mxu0 0.0
    %141 = vmatprep.subr.mxu0 0.0
    %142 = vmatpush1.msra.mxu0 0.0
    %143 = vmatprep.subr.mxu0 0.0
    %144 = vmatpush1.msra.mxu0 0.0
    %145 = vmatprep.subr.mxu0 0.0
    %146 = vmatpush1.msra.mxu0 0.0
    %147 = vmatprep.subr.mxu0 0.0
    %148 = vmatpush1.msra.mxu0 0.0
    %149 = vmatprep.subr.mxu0 0.0
    %150 = vmatpush1.msra.mxu0 0.0
    %151 = vmatprep.subr.mxu0 0.0
    %152 = vmatpush1.msra.mxu0 0.0
    %153 = vmatprep.subr.mxu0 0.0
    %154 = vmatpush1.msra.mxu0 0.0
    %155 = vmatprep.subr.mxu0 0.0
    %156 = vmatpush1.msra.mxu0 0.0
    %157 = vmatprep.subr.mxu0 0.0
    %158 = vmatpush1.msra.mxu0 0.0
    %159 = vmatprep.subr.mxu0 0.0
    %160 = vmatpush1.msra.mxu0 0.0
    %161 = vmatprep.subr.mxu0 0.0
    %162 = vmatpush1.msra.mxu0 0.0
    %163 = vmatprep.subr.mxu0 0.0
    %164 = vmatpush1.msra.mxu0 0.0
    %165 = vmatprep.subr.mxu0 0.0
    %166 = vmatpush1.msra.mxu0 0.0
    %167 = vmatprep.subr.mxu0 0.0
    %168 = vmatpush1.msra.mxu0 0.0
    %169 = vmatprep.subr.mxu0 0.0
    %170 = vmatpush1.msra.mxu0 0.0
    %171 = vmatprep.subr.mxu0 0.0
    %172 = vmatpush1.msra.mxu0 0.0
    %173 = vmatprep.subr.mxu0 0.0
    %174 = vmatpush1.msra.mxu0 0.0
    %175 = vmatprep.subr.mxu0 0.0
    %176 = vmatpush1.msra.mxu0 0.0
    %177 = vmatprep.subr.mxu0 0.0
    %178 = vmatpush1.msra.mxu0 0.0
    %179 = vmatprep.mubr.f32.mxu0 0.0
    %180 = vmatmul.mubr.f32.gmra.mrb[0].mxu0 %v110
    %v181 = vpop.f32.mrb[0].mxu0
    %v182 = vadd.f32 %v108, %v181
    %v183 = vpop.f32.mrb[0].mxu0
    %184 = vmatprep.mubr.f32.mxu0 0.0
    %185 = vmatmul.mubr.f32.gmra.mrb[0].mxu0 %v113
    %v186 = vpop.f32.mrb[0].mxu0
    %v187 = vadd.f32 %v108, %v186
    %v188 = vpop.f32.mrb[0].mxu0
    %189 = vdwg.mxu0
    %191 = vrot.lane.b32.xlu0 %v182, 120
    %v192 = vpop.permute.xlu0 %191
    %vm193 = vcmask 64512
    %v194 = vsel %vm193, %v182, 0
    %v196 = vsel %vm193, %v192, 0
    %198 = vmatprep.subr.mxu0 0.0
    %199 = vmatpush1.xpose.msra.mxu0 %v196
    %200 = vmatprep.subr.mxu0 0.0
    %201 = vmatpush1.xpose.msra.mxu0 0.0
    %202 = vmatprep.subr.mxu0 0.0
    %203 = vmatpush1.xpose.msra.mxu0 0.0
    %204 = vmatprep.subr.mxu0 0.0
    %205 = vmatpush1.xpose.msra.mxu0 0.0
    %206 = vmatprep.subr.mxu0 0.0
    %207 = vmatpush1.xpose.msra.mxu0 0.0
    %208 = vmatprep.subr.mxu0 0.0
    %209 = vmatpush1.xpose.msra.mxu0 0.0
    %210 = vmatprep.subr.mxu0 0.0
    %211 = vmatpush1.xpose.msra.mxu0 0.0
    %212 = vmatprep.subr.mxu0 0.0
    %213 = vmatpush1.xpose.msra.mxu0 0.0
    %214 = vmatprep.subr.mxu0 0.0
    %215 = vmatpush1.xpose.msra.mxu0 0.0
    %216 = vmatprep.subr.mxu0 0.0
    %217 = vmatpush1.xpose.msra.mxu0 0.0
    %218 = vmatprep.subr.mxu0 0.0
    %219 = vmatpush1.xpose.msra.mxu0 0.0
    %220 = vmatprep.subr.mxu0 0.0
    %221 = vmatpush1.xpose.msra.mxu0 0.0
    %222 = vmatprep.subr.mxu0 0.0
    %223 = vmatpush1.xpose.msra.mxu0 0.0
    %224 = vmatprep.subr.mxu0 0.0
    %225 = vmatpush1.xpose.msra.mxu0 0.0
    %226 = vmatprep.subr.mxu0 0.0
    %227 = vmatpush1.xpose.msra.mxu0 0.0
    %228 = vmatprep.subr.mxu0 0.0
    %229 = vmatpush1.xpose.msra.mxu0 0.0
    %230 = vmatprep.subr.mxu0 0.0
    %231 = vmatpush1.xpose.msra.mxu0 0.0
    %232 = vmatprep.subr.mxu0 0.0
    %233 = vmatpush1.xpose.msra.mxu0 0.0
    %234 = vmatprep.subr.mxu0 0.0
    %235 = vmatpush1.xpose.msra.mxu0 0.0
    %236 = vmatprep.subr.mxu0 0.0
    %237 = vmatpush1.xpose.msra.mxu0 0.0
    %238 = vmatprep.subr.mxu0 0.0
    %239 = vmatpush1.xpose.msra.mxu0 0.0
    %240 = vmatprep.subr.mxu0 0.0
    %241 = vmatpush1.xpose.msra.mxu0 0.0
    %242 = vmatprep.subr.mxu0 0.0
    %243 = vmatpush1.xpose.msra.mxu0 0.0
    %244 = vmatprep.subr.mxu0 0.0
    %245 = vmatpush1.xpose.msra.mxu0 0.0
    %246 = vmatprep.subr.mxu0 0.0
    %247 = vmatpush1.xpose.msra.mxu0 0.0
    %248 = vmatprep.subr.mxu0 0.0
    %249 = vmatpush1.xpose.msra.mxu0 0.0
    %250 = vmatprep.subr.mxu0 0.0
    %251 = vmatpush1.xpose.msra.mxu0 0.0
    %252 = vmatprep.subr.mxu0 0.0
    %253 = vmatpush1.xpose.msra.mxu0 0.0
    %254 = vmatprep.subr.mxu0 0.0
    %255 = vmatpush1.xpose.msra.mxu0 0.0
    %256 = vmatprep.subr.mxu0 0.0
    %257 = vmatpush1.xpose.msra.mxu0 0.0
    %258 = vmatprep.subr.mxu0 0.0
    %259 = vmatpush1.xpose.msra.mxu0 0.0
    %260 = vmatprep.subr.mxu0 0.0
    %261 = vmatpush1.xpose.msra.mxu0 0.0
    %262 = vmatprep.mubr.f32.mxu0 0.0
    %263 = vmatmul.mubr.f32.gmra.mrb[0].mxu0 %v194
    %v264 = vpop.f32.mrb[0].mxu0
    %v265 = vadd.f32 0.0, %v264
    %v266 = vpop.f32.mrb[0].mxu0
    %267 = vdwg.mxu0
    %268 = vrot.lane.b32.xlu0 %v182, 104
    %v269 = vpop.permute.xlu0 %268
    %270 = vrot.lane.b32.xlu0 %v182, 96
    %v271 = vpop.permute.xlu0 %270
    %v272 = vsel %vm193, %v269, 0
    %v274 = vsel %vm193, %v271, 0
    %276 = vmatprep.subr.mxu0 0.0
    %277 = vmatpush1.xpose.msra.mxu0 %v274
    %278 = vmatprep.subr.mxu0 0.0
    %279 = vmatpush1.xpose.msra.mxu0 0.0
    %280 = vmatprep.subr.mxu0 0.0
    %281 = vmatpush1.xpose.msra.mxu0 0.0
    %282 = vmatprep.subr.mxu0 0.0
    %283 = vmatpush1.xpose.msra.mxu0 0.0
    %284 = vmatprep.subr.mxu0 0.0
    %285 = vmatpush1.xpose.msra.mxu0 0.0
    %286 = vmatprep.subr.mxu0 0.0
    %287 = vmatpush1.xpose.msra.mxu0 0.0
    %288 = vmatprep.subr.mxu0 0.0
    %289 = vmatpush1.xpose.msra.mxu0 0.0
    %290 = vmatprep.subr.mxu0 0.0
    %291 = vmatpush1.xpose.msra.mxu0 0.0
    %292 = vmatprep.subr.mxu0 0.0
    %293 = vmatpush1.xpose.msra.mxu0 0.0
    %294 = vmatprep.subr.mxu0 0.0
    %295 = vmatpush1.xpose.msra.mxu0 0.0
    %296 = vmatprep.subr.mxu0 0.0
    %297 = vmatpush1.xpose.msra.mxu0 0.0
    %298 = vmatprep.subr.mxu0 0.0
    %299 = vmatpush1.xpose.msra.mxu0 0.0
    %300 = vmatprep.subr.mxu0 0.0
    %301 = vmatpush1.xpose.msra.mxu0 0.0
    %302 = vmatprep.subr.mxu0 0.0
    %303 = vmatpush1.xpose.msra.mxu0 0.0
    %304 = vmatprep.subr.mxu0 0.0
    %305 = vmatpush1.xpose.msra.mxu0 0.0
    %306 = vmatprep.subr.mxu0 0.0
    %307 = vmatpush1.xpose.msra.mxu0 0.0
    %308 = vmatprep.subr.mxu0 0.0
    %309 = vmatpush1.xpose.msra.mxu0 0.0
    %310 = vmatprep.subr.mxu0 0.0
    %311 = vmatpush1.xpose.msra.mxu0 0.0
    %312 = vmatprep.subr.mxu0 0.0
    %313 = vmatpush1.xpose.msra.mxu0 0.0
    %314 = vmatprep.subr.mxu0 0.0
    %315 = vmatpush1.xpose.msra.mxu0 0.0
    %316 = vmatprep.subr.mxu0 0.0
    %317 = vmatpush1.xpose.msra.mxu0 0.0
    %318 = vmatprep.subr.mxu0 0.0
    %319 = vmatpush1.xpose.msra.mxu0 0.0
    %320 = vmatprep.subr.mxu0 0.0
    %321 = vmatpush1.xpose.msra.mxu0 0.0
    %322 = vmatprep.subr.mxu0 0.0
    %323 = vmatpush1.xpose.msra.mxu0 0.0
    %324 = vmatprep.subr.mxu0 0.0
    %325 = vmatpush1.xpose.msra.mxu0 0.0
    %326 = vmatprep.subr.mxu0 0.0
    %327 = vmatpush1.xpose.msra.mxu0 0.0
    %328 = vmatprep.subr.mxu0 0.0
    %329 = vmatpush1.xpose.msra.mxu0 0.0
    %330 = vmatprep.subr.mxu0 0.0
    %331 = vmatpush1.xpose.msra.mxu0 0.0
    %332 = vmatprep.subr.mxu0 0.0
    %333 = vmatpush1.xpose.msra.mxu0 0.0
    %334 = vmatprep.subr.mxu0 0.0
    %335 = vmatpush1.xpose.msra.mxu0 0.0
    %336 = vmatprep.subr.mxu0 0.0
    %337 = vmatpush1.xpose.msra.mxu0 0.0
    %338 = vmatprep.subr.mxu0 0.0
    %339 = vmatpush1.xpose.msra.mxu0 0.0
    %340 = vmatprep.mubr.f32.mxu0 0.0
    %341 = vmatmul.mubr.f32.gmra.mrb[0].mxu0 %v272
    %v342 = vpop.f32.mrb[0].mxu0
    %v343 = vadd.f32 0.0, %v342
    %v344 = vpop.f32.mrb[0].mxu0
    %345 = vdwg.mxu0
    %346 = vrot.lane.b32.xlu0 %v182, 80
    %v347 = vpop.permute.xlu0 %346
    %348 = vrot.lane.b32.xlu0 %v182, 72
    %v349 = vpop.permute.xlu0 %348
    %v350 = vsel %vm193, %v347, 0
    %v352 = vsel %vm193, %v349, 0
    %354 = vmatprep.subr.mxu0 0.0
    %355 = vmatpush1.xpose.msra.mxu0 %v352
    %356 = vmatprep.subr.mxu0 0.0
    %357 = vmatpush1.xpose.msra.mxu0 0.0
    %358 = vmatprep.subr.mxu0 0.0
    %359 = vmatpush1.xpose.msra.mxu0 0.0
    %360 = vmatprep.subr.mxu0 0.0
    %361 = vmatpush1.xpose.msra.mxu0 0.0
    %362 = vmatprep.subr.mxu0 0.0
    %363 = vmatpush1.xpose.msra.mxu0 0.0
    %364 = vmatprep.subr.mxu0 0.0
    %365 = vmatpush1.xpose.msra.mxu0 0.0
    %366 = vmatprep.subr.mxu0 0.0
    %367 = vmatpush1.xpose.msra.mxu0 0.0
    %368 = vmatprep.subr.mxu0 0.0
    %369 = vmatpush1.xpose.msra.mxu0 0.0
    %370 = vmatprep.subr.mxu0 0.0
    %371 = vmatpush1.xpose.msra.mxu0 0.0
    %372 = vmatprep.subr.mxu0 0.0
    %373 = vmatpush1.xpose.msra.mxu0 0.0
    %374 = vmatprep.subr.mxu0 0.0
    %375 = vmatpush1.xpose.msra.mxu0 0.0
    %376 = vmatprep.subr.mxu0 0.0
    %377 = vmatpush1.xpose.msra.mxu0 0.0
    %378 = vmatprep.subr.mxu0 0.0
    %379 = vmatpush1.xpose.msra.mxu0 0.0
    %380 = vmatprep.subr.mxu0 0.0
    %381 = vmatpush1.xpose.msra.mxu0 0.0
    %382 = vmatprep.subr.mxu0 0.0
    %383 = vmatpush1.xpose.msra.mxu0 0.0
    %384 = vmatprep.subr.mxu0 0.0
    %385 = vmatpush1.xpose.msra.mxu0 0.0
    %386 = vmatprep.subr.mxu0 0.0
    %387 = vmatpush1.xpose.msra.mxu0 0.0
    %388 = vmatprep.subr.mxu0 0.0
    %389 = vmatpush1.xpose.msra.mxu0 0.0
    %390 = vmatprep.subr.mxu0 0.0
    %391 = vmatpush1.xpose.msra.mxu0 0.0
    %392 = vmatprep.subr.mxu0 0.0
    %393 = vmatpush1.xpose.msra.mxu0 0.0
    %394 = vmatprep.subr.mxu0 0.0
    %395 = vmatpush1.xpose.msra.mxu0 0.0
    %396 = vmatprep.subr.mxu0 0.0
    %397 = vmatpush1.xpose.msra.mxu0 0.0
    %398 = vmatprep.subr.mxu0 0.0
    %399 = vmatpush1.xpose.msra.mxu0 0.0
    %400 = vmatprep.subr.mxu0 0.0
    %401 = vmatpush1.xpose.msra.mxu0 0.0
    %402 = vmatprep.subr.mxu0 0.0
    %403 = vmatpush1.xpose.msra.mxu0 0.0
    %404 = vmatprep.subr.mxu0 0.0
    %405 = vmatpush1.xpose.msra.mxu0 0.0
    %406 = vmatprep.subr.mxu0 0.0
    %407 = vmatpush1.xpose.msra.mxu0 0.0
    %408 = vmatprep.subr.mxu0 0.0
    %409 = vmatpush1.xpose.msra.mxu0 0.0
    %410 = vmatprep.subr.mxu0 0.0
    %411 = vmatpush1.xpose.msra.mxu0 0.0
    %412 = vmatprep.subr.mxu0 0.0
    %413 = vmatpush1.xpose.msra.mxu0 0.0
    %414 = vmatprep.subr.mxu0 0.0
    %415 = vmatpush1.xpose.msra.mxu0 0.0
    %416 = vmatprep.subr.mxu0 0.0
    %417 = vmatpush1.xpose.msra.mxu0 0.0
    %418 = vmatprep.mubr.f32.mxu0 0.0
    %419 = vmatmul.mubr.f32.gmra.mrb[0].mxu0 %v350
    %v420 = vpop.f32.mrb[0].mxu0
    %v421 = vadd.f32 0.0, %v420
    %v422 = vpop.f32.mrb[0].mxu0
    %423 = vdwg.mxu0
    %424 = vrot.lane.b32.xlu0 %v182, 56
    %v425 = vpop.permute.xlu0 %424
    %426 = vrot.lane.b32.xlu0 %v182, 48
    %v427 = vpop.permute.xlu0 %426
    %v428 = vsel %vm193, %v425, 0
    %v430 = vsel %vm193, %v427, 0
    %432 = vmatprep.subr.mxu0 0.0
    %433 = vmatpush1.xpose.msra.mxu0 %v430
    %434 = vmatprep.subr.mxu0 0.0
    %435 = vmatpush1.xpose.msra.mxu0 0.0
    %436 = vmatprep.subr.mxu0 0.0
    %437 = vmatpush1.xpose.msra.mxu0 0.0
    %438 = vmatprep.subr.mxu0 0.0
    %439 = vmatpush1.xpose.msra.mxu0 0.0
    %440 = vmatprep.subr.mxu0 0.0
    %441 = vmatpush1.xpose.msra.mxu0 0.0
    %442 = vmatprep.subr.mxu0 0.0
    %443 = vmatpush1.xpose.msra.mxu0 0.0
    %444 = vmatprep.subr.mxu0 0.0
    %445 = vmatpush1.xpose.msra.mxu0 0.0
    %446 = vmatprep.subr.mxu0 0.0
    %447 = vmatpush1.xpose.msra.mxu0 0.0
    %448 = vmatprep.subr.mxu0 0.0
    %449 = vmatpush1.xpose.msra.mxu0 0.0
    %450 = vmatprep.subr.mxu0 0.0
    %451 = vmatpush1.xpose.msra.mxu0 0.0
    %452 = vmatprep.subr.mxu0 0.0
    %453 = vmatpush1.xpose.msra.mxu0 0.0
    %454 = vmatprep.subr.mxu0 0.0
    %455 = vmatpush1.xpose.msra.mxu0 0.0
    %456 = vmatprep.subr.mxu0 0.0
    %457 = vmatpush1.xpose.msra.mxu0 0.0
    %458 = vmatprep.subr.mxu0 0.0
    %459 = vmatpush1.xpose.msra.mxu0 0.0
    %460 = vmatprep.subr.mxu0 0.0
    %461 = vmatpush1.xpose.msra.mxu0 0.0
    %462 = vmatprep.subr.mxu0 0.0
    %463 = vmatpush1.xpose.msra.mxu0 0.0
    %464 = vmatprep.subr.mxu0 0.0
    %465 = vmatpush1.xpose.msra.mxu0 0.0
    %466 = vmatprep.subr.mxu0 0.0
    %467 = vmatpush1.xpose.msra.mxu0 0.0
    %468 = vmatprep.subr.mxu0 0.0
    %469 = vmatpush1.xpose.msra.mxu0 0.0
    %470 = vmatprep.subr.mxu0 0.0
    %471 = vmatpush1.xpose.msra.mxu0 0.0
    %472 = vmatprep.subr.mxu0 0.0
    %473 = vmatpush1.xpose.msra.mxu0 0.0
    %474 = vmatprep.subr.mxu0 0.0
    %475 = vmatpush1.xpose.msra.mxu0 0.0
    %476 = vmatprep.subr.mxu0 0.0
    %477 = vmatpush1.xpose.msra.mxu0 0.0
    %478 = vmatprep.subr.mxu0 0.0
    %479 = vmatpush1.xpose.msra.mxu0 0.0
    %480 = vmatprep.subr.mxu0 0.0
    %481 = vmatpush1.xpose.msra.mxu0 0.0
    %482 = vmatprep.subr.mxu0 0.0
    %483 = vmatpush1.xpose.msra.mxu0 0.0
    %484 = vmatprep.subr.mxu0 0.0
    %485 = vmatpush1.xpose.msra.mxu0 0.0
    %486 = vmatprep.subr.mxu0 0.0
    %487 = vmatpush1.xpose.msra.mxu0 0.0
    %488 = vmatprep.subr.mxu0 0.0
    %489 = vmatpush1.xpose.msra.mxu0 0.0
    %490 = vmatprep.subr.mxu0 0.0
    %491 = vmatpush1.xpose.msra.mxu0 0.0
    %492 = vmatprep.subr.mxu0 0.0
    %493 = vmatpush1.xpose.msra.mxu0 0.0
    %494 = vmatprep.subr.mxu0 0.0
    %495 = vmatpush1.xpose.msra.mxu0 0.0
    %496 = vmatprep.mubr.f32.mxu0 0.0
    %497 = vmatmul.mubr.f32.gmra.mrb[0].mxu0 %v428
    %v498 = vpop.f32.mrb[0].mxu0
    %v499 = vadd.f32 0.0, %v498
    %v500 = vpop.f32.mrb[0].mxu0
    %501 = vdwg.mxu0
    %503 = vrot.lane.b32.xlu0 %v187, 120
    %v504 = vpop.permute.xlu0 %503
    %v505 = vsel %vm193, %v187, 0
    %v507 = vsel %vm193, %v504, 0
    %509 = vmatprep.subr.mxu0 0.0
    %510 = vmatpush1.xpose.msra.mxu0 %v507
    %511 = vmatprep.subr.mxu0 0.0
    %512 = vmatpush1.xpose.msra.mxu0 0.0
    %513 = vmatprep.subr.mxu0 0.0
    %514 = vmatpush1.xpose.msra.mxu0 0.0
    %515 = vmatprep.subr.mxu0 0.0
    %516 = vmatpush1.xpose.msra.mxu0 0.0
    %517 = vmatprep.subr.mxu0 0.0
    %518 = vmatpush1.xpose.msra.mxu0 0.0
    %519 = vmatprep.subr.mxu0 0.0
    %520 = vmatpush1.xpose.msra.mxu0 0.0
    %521 = vmatprep.subr.mxu0 0.0
    %522 = vmatpush1.xpose.msra.mxu0 0.0
    %523 = vmatprep.subr.mxu0 0.0
    %524 = vmatpush1.xpose.msra.mxu0 0.0
    %525 = vmatprep.subr.mxu0 0.0
    %526 = vmatpush1.xpose.msra.mxu0 0.0
    %527 = vmatprep.subr.mxu0 0.0
    %528 = vmatpush1.xpose.msra.mxu0 0.0
    %529 = vmatprep.subr.mxu0 0.0
    %530 = vmatpush1.xpose.msra.mxu0 0.0
    %531 = vmatprep.subr.mxu0 0.0
    %532 = vmatpush1.xpose.msra.mxu0 0.0
    %533 = vmatprep.subr.mxu0 0.0
    %534 = vmatpush1.xpose.msra.mxu0 0.0
    %535 = vmatprep.subr.mxu0 0.0
    %536 = vmatpush1.xpose.msra.mxu0 0.0
    %537 = vmatprep.subr.mxu0 0.0
    %538 = vmatpush1.xpose.msra.mxu0 0.0
    %539 = vmatprep.subr.mxu0 0.0
    %540 = vmatpush1.xpose.msra.mxu0 0.0
    %541 = vmatprep.subr.mxu0 0.0
    %542 = vmatpush1.xpose.msra.mxu0 0.0
    %543 = vmatprep.subr.mxu0 0.0
    %544 = vmatpush1.xpose.msra.mxu0 0.0
    %545 = vmatprep.subr.mxu0 0.0
    %546 = vmatpush1.xpose.msra.mxu0 0.0
    %547 = vmatprep.subr.mxu0 0.0
    %548 = vmatpush1.xpose.msra.mxu0 0.0
    %549 = vmatprep.subr.mxu0 0.0
    %550 = vmatpush1.xpose.msra.mxu0 0.0
    %551 = vmatprep.subr.mxu0 0.0
    %552 = vmatpush1.xpose.msra.mxu0 0.0
    %553 = vmatprep.subr.mxu0 0.0
    %554 = vmatpush1.xpose.msra.mxu0 0.0
    %555 = vmatprep.subr.mxu0 0.0
    %556 = vmatpush1.xpose.msra.mxu0 0.0
    %557 = vmatprep.subr.mxu0 0.0
    %558 = vmatpush1.xpose.msra.mxu0 0.0
    %559 = vmatprep.subr.mxu0 0.0
    %560 = vmatpush1.xpose.msra.mxu0 0.0
    %561 = vmatprep.subr.mxu0 0.0
    %562 = vmatpush1.xpose.msra.mxu0 0.0
    %563 = vmatprep.subr.mxu0 0.0
    %564 = vmatpush1.xpose.msra.mxu0 0.0
    %565 = vmatprep.subr.mxu0 0.0
    %566 = vmatpush1.xpose.msra.mxu0 0.0
    %567 = vmatprep.subr.mxu0 0.0
    %568 = vmatpush1.xpose.msra.mxu0 0.0
    %569 = vmatprep.subr.mxu0 0.0
    %570 = vmatpush1.xpose.msra.mxu0 0.0
    %571 = vmatprep.subr.mxu0 0.0
    %572 = vmatpush1.xpose.msra.mxu0 0.0
    %573 = vmatprep.mubr.f32.mxu0 0.0
    %574 = vmatmul.mubr.f32.gmra.mrb[0].mxu0 %v505
    %v575 = vpop.f32.mrb[0].mxu0
    %v576 = vadd.f32 0.0, %v575
    %v577 = vpop.f32.mrb[0].mxu0
    %578 = vdwg.mxu0
    %579 = vrot.lane.b32.xlu0 %v187, 104
    %v580 = vpop.permute.xlu0 %579
    %581 = vrot.lane.b32.xlu0 %v187, 96
    %v582 = vpop.permute.xlu0 %581
    %v583 = vsel %vm193, %v580, 0
    %v585 = vsel %vm193, %v582, 0
    %587 = vmatprep.subr.mxu0 0.0
    %588 = vmatpush1.xpose.msra.mxu0 %v585
    %589 = vmatprep.subr.mxu0 0.0
    %590 = vmatpush1.xpose.msra.mxu0 0.0
    %591 = vmatprep.subr.mxu0 0.0
    %592 = vmatpush1.xpose.msra.mxu0 0.0
    %593 = vmatprep.subr.mxu0 0.0
    %594 = vmatpush1.xpose.msra.mxu0 0.0
    %595 = vmatprep.subr.mxu0 0.0
    %596 = vmatpush1.xpose.msra.mxu0 0.0
    %597 = vmatprep.subr.mxu0 0.0
    %598 = vmatpush1.xpose.msra.mxu0 0.0
    %599 = vmatprep.subr.mxu0 0.0
    %600 = vmatpush1.xpose.msra.mxu0 0.0
    %601 = vmatprep.subr.mxu0 0.0
    %602 = vmatpush1.xpose.msra.mxu0 0.0
    %603 = vmatprep.subr.mxu0 0.0
    %604 = vmatpush1.xpose.msra.mxu0 0.0
    %605 = vmatprep.subr.mxu0 0.0
    %606 = vmatpush1.xpose.msra.mxu0 0.0
    %607 = vmatprep.subr.mxu0 0.0
    %608 = vmatpush1.xpose.msra.mxu0 0.0
    %609 = vmatprep.subr.mxu0 0.0
    %610 = vmatpush1.xpose.msra.mxu0 0.0
    %611 = vmatprep.subr.mxu0 0.0
    %612 = vmatpush1.xpose.msra.mxu0 0.0
    %613 = vmatprep.subr.mxu0 0.0
    %614 = vmatpush1.xpose.msra.mxu0 0.0
    %615 = vmatprep.subr.mxu0 0.0
    %616 = vmatpush1.xpose.msra.mxu0 0.0
    %617 = vmatprep.subr.mxu0 0.0
    %618 = vmatpush1.xpose.msra.mxu0 0.0
    %619 = vmatprep.subr.mxu0 0.0
    %620 = vmatpush1.xpose.msra.mxu0 0.0
    %621 = vmatprep.subr.mxu0 0.0
    %622 = vmatpush1.xpose.msra.mxu0 0.0
    %623 = vmatprep.subr.mxu0 0.0
    %624 = vmatpush1.xpose.msra.mxu0 0.0
    %625 = vmatprep.subr.mxu0 0.0
    %626 = vmatpush1.xpose.msra.mxu0 0.0
    %627 = vmatprep.subr.mxu0 0.0
    %628 = vmatpush1.xpose.msra.mxu0 0.0
    %629 = vmatprep.subr.mxu0 0.0
    %630 = vmatpush1.xpose.msra.mxu0 0.0
    %631 = vmatprep.subr.mxu0 0.0
    %632 = vmatpush1.xpose.msra.mxu0 0.0
    %633 = vmatprep.subr.mxu0 0.0
    %634 = vmatpush1.xpose.msra.mxu0 0.0
    %635 = vmatprep.subr.mxu0 0.0
    %636 = vmatpush1.xpose.msra.mxu0 0.0
    %637 = vmatprep.subr.mxu0 0.0
    %638 = vmatpush1.xpose.msra.mxu0 0.0
    %639 = vmatprep.subr.mxu0 0.0
    %640 = vmatpush1.xpose.msra.mxu0 0.0
    %641 = vmatprep.subr.mxu0 0.0
    %642 = vmatpush1.xpose.msra.mxu0 0.0
    %643 = vmatprep.subr.mxu0 0.0
    %644 = vmatpush1.xpose.msra.mxu0 0.0
    %645 = vmatprep.subr.mxu0 0.0
    %646 = vmatpush1.xpose.msra.mxu0 0.0
    %647 = vmatprep.subr.mxu0 0.0
    %648 = vmatpush1.xpose.msra.mxu0 0.0
    %649 = vmatprep.subr.mxu0 0.0
    %650 = vmatpush1.xpose.msra.mxu0 0.0
    %651 = vmatprep.mubr.f32.mxu0 0.0
    %652 = vmatmul.mubr.f32.gmra.mrb[0].mxu0 %v583
    %v653 = vpop.f32.mrb[0].mxu0
    %v654 = vadd.f32 0.0, %v653
    %v655 = vpop.f32.mrb[0].mxu0
    %656 = vdwg.mxu0
    %657 = vrot.lane.b32.xlu0 %v187, 80
    %v658 = vpop.permute.xlu0 %657
    %659 = vrot.lane.b32.xlu0 %v187, 72
    %v660 = vpop.permute.xlu0 %659
    %v661 = vsel %vm193, %v658, 0
    %v663 = vsel %vm193, %v660, 0
    %665 = vmatprep.subr.mxu0 0.0
    %666 = vmatpush1.xpose.msra.mxu0 %v663
    %667 = vmatprep.subr.mxu0 0.0
    %668 = vmatpush1.xpose.msra.mxu0 0.0
    %669 = vmatprep.subr.mxu0 0.0
    %670 = vmatpush1.xpose.msra.mxu0 0.0
    %671 = vmatprep.subr.mxu0 0.0
    %672 = vmatpush1.xpose.msra.mxu0 0.0
    %673 = vmatprep.subr.mxu0 0.0
    %674 = vmatpush1.xpose.msra.mxu0 0.0
    %675 = vmatprep.subr.mxu0 0.0
    %676 = vmatpush1.xpose.msra.mxu0 0.0
    %677 = vmatprep.subr.mxu0 0.0
    %678 = vmatpush1.xpose.msra.mxu0 0.0
    %679 = vmatprep.subr.mxu0 0.0
    %680 = vmatpush1.xpose.msra.mxu0 0.0
    %681 = vmatprep.subr.mxu0 0.0
    %682 = vmatpush1.xpose.msra.mxu0 0.0
    %683 = vmatprep.subr.mxu0 0.0
    %684 = vmatpush1.xpose.msra.mxu0 0.0
    %685 = vmatprep.subr.mxu0 0.0
    %686 = vmatpush1.xpose.msra.mxu0 0.0
    %687 = vmatprep.subr.mxu0 0.0
    %688 = vmatpush1.xpose.msra.mxu0 0.0
    %689 = vmatprep.subr.mxu0 0.0
    %690 = vmatpush1.xpose.msra.mxu0 0.0
    %691 = vmatprep.subr.mxu0 0.0
    %692 = vmatpush1.xpose.msra.mxu0 0.0
    %693 = vmatprep.subr.mxu0 0.0
    %694 = vmatpush1.xpose.msra.mxu0 0.0
    %695 = vmatprep.subr.mxu0 0.0
    %696 = vmatpush1.xpose.msra.mxu0 0.0
    %697 = vmatprep.subr.mxu0 0.0
    %698 = vmatpush1.xpose.msra.mxu0 0.0
    %699 = vmatprep.subr.mxu0 0.0
    %700 = vmatpush1.xpose.msra.mxu0 0.0
    %701 = vmatprep.subr.mxu0 0.0
    %702 = vmatpush1.xpose.msra.mxu0 0.0
    %703 = vmatprep.subr.mxu0 0.0
    %704 = vmatpush1.xpose.msra.mxu0 0.0
    %705 = vmatprep.subr.mxu0 0.0
    %706 = vmatpush1.xpose.msra.mxu0 0.0
    %707 = vmatprep.subr.mxu0 0.0
    %708 = vmatpush1.xpose.msra.mxu0 0.0
    %709 = vmatprep.subr.mxu0 0.0
    %710 = vmatpush1.xpose.msra.mxu0 0.0
    %711 = vmatprep.subr.mxu0 0.0
    %712 = vmatpush1.xpose.msra.mxu0 0.0
    %713 = vmatprep.subr.mxu0 0.0
    %714 = vmatpush1.xpose.msra.mxu0 0.0
    %715 = vmatprep.subr.mxu0 0.0
    %716 = vmatpush1.xpose.msra.mxu0 0.0
    %717 = vmatprep.subr.mxu0 0.0
    %718 = vmatpush1.xpose.msra.mxu0 0.0
    %719 = vmatprep.subr.mxu0 0.0
    %720 = vmatpush1.xpose.msra.mxu0 0.0
    %721 = vmatprep.subr.mxu0 0.0
    %722 = vmatpush1.xpose.msra.mxu0 0.0
    %723 = vmatprep.subr.mxu0 0.0
    %724 = vmatpush1.xpose.msra.mxu0 0.0
    %725 = vmatprep.subr.mxu0 0.0
    %726 = vmatpush1.xpose.msra.mxu0 0.0
    %727 = vmatprep.subr.mxu0 0.0
    %728 = vmatpush1.xpose.msra.mxu0 0.0
    %729 = vmatprep.mubr.f32.mxu0 0.0
    %730 = vmatmul.mubr.f32.gmra.mrb[0].mxu0 %v661
    %v731 = vpop.f32.mrb[0].mxu0
    %v732 = vadd.f32 0.0, %v731
    %v733 = vpop.f32.mrb[0].mxu0
    %734 = vdwg.mxu0
    %735 = vrot.lane.b32.xlu0 %v187, 56
    %v736 = vpop.permute.xlu0 %735
    %737 = vrot.lane.b32.xlu0 %v187, 48
    %v738 = vpop.permute.xlu0 %737
    %v739 = vsel %vm193, %v736, 0
    %v741 = vsel %vm193, %v738, 0
    %743 = vmatprep.subr.mxu0 0.0
    %744 = vmatpush1.xpose.msra.mxu0 %v741
    %745 = vmatprep.subr.mxu0 0.0
    %746 = vmatpush1.xpose.msra.mxu0 0.0
    %747 = vmatprep.subr.mxu0 0.0
    %748 = vmatpush1.xpose.msra.mxu0 0.0
    %749 = vmatprep.subr.mxu0 0.0
    %750 = vmatpush1.xpose.msra.mxu0 0.0
    %751 = vmatprep.subr.mxu0 0.0
    %752 = vmatpush1.xpose.msra.mxu0 0.0
    %753 = vmatprep.subr.mxu0 0.0
    %754 = vmatpush1.xpose.msra.mxu0 0.0
    %755 = vmatprep.subr.mxu0 0.0
    %756 = vmatpush1.xpose.msra.mxu0 0.0
    %757 = vmatprep.subr.mxu0 0.0
    %758 = vmatpush1.xpose.msra.mxu0 0.0
    %759 = vmatprep.subr.mxu0 0.0
    %760 = vmatpush1.xpose.msra.mxu0 0.0
    %761 = vmatprep.subr.mxu0 0.0
    %762 = vmatpush1.xpose.msra.mxu0 0.0
    %763 = vmatprep.subr.mxu0 0.0
    %764 = vmatpush1.xpose.msra.mxu0 0.0
    %765 = vmatprep.subr.mxu0 0.0
    %766 = vmatpush1.xpose.msra.mxu0 0.0
    %767 = vmatprep.subr.mxu0 0.0
    %768 = vmatpush1.xpose.msra.mxu0 0.0
    %769 = vmatprep.subr.mxu0 0.0
    %770 = vmatpush1.xpose.msra.mxu0 0.0
    %771 = vmatprep.subr.mxu0 0.0
    %772 = vmatpush1.xpose.msra.mxu0 0.0
    %773 = vmatprep.subr.mxu0 0.0
    %774 = vmatpush1.xpose.msra.mxu0 0.0
    %775 = vmatprep.subr.mxu0 0.0
    %776 = vmatpush1.xpose.msra.mxu0 0.0
    %777 = vmatprep.subr.mxu0 0.0
    %778 = vmatpush1.xpose.msra.mxu0 0.0
    %779 = vmatprep.subr.mxu0 0.0
    %780 = vmatpush1.xpose.msra.mxu0 0.0
    %781 = vmatprep.subr.mxu0 0.0
    %782 = vmatpush1.xpose.msra.mxu0 0.0
    %783 = vmatprep.subr.mxu0 0.0
    %784 = vmatpush1.xpose.msra.mxu0 0.0
    %785 = vmatprep.subr.mxu0 0.0
    %786 = vmatpush1.xpose.msra.mxu0 0.0
    %787 = vmatprep.subr.mxu0 0.0
    %788 = vmatpush1.xpose.msra.mxu0 0.0
    %789 = vmatprep.subr.mxu0 0.0
    %790 = vmatpush1.xpose.msra.mxu0 0.0
    %791 = vmatprep.subr.mxu0 0.0
    %792 = vmatpush1.xpose.msra.mxu0 0.0
    %793 = vmatprep.subr.mxu0 0.0
    %794 = vmatpush1.xpose.msra.mxu0 0.0
    %795 = vmatprep.subr.mxu0 0.0
    %796 = vmatpush1.xpose.msra.mxu0 0.0
    %797 = vmatprep.subr.mxu0 0.0
    %798 = vmatpush1.xpose.msra.mxu0 0.0
    %799 = vmatprep.subr.mxu0 0.0
    %800 = vmatpush1.xpose.msra.mxu0 0.0
    %801 = vmatprep.subr.mxu0 0.0
    %802 = vmatpush1.xpose.msra.mxu0 0.0
    %803 = vmatprep.subr.mxu0 0.0
    %804 = vmatpush1.xpose.msra.mxu0 0.0
    %805 = vmatprep.subr.mxu0 0.0
    %806 = vmatpush1.xpose.msra.mxu0 0.0
    %807 = vmatprep.mubr.f32.mxu0 0.0
    %808 = vmatmul.mubr.f32.gmra.mrb[0].mxu0 %v739
    %v809 = vpop.f32.mrb[0].mxu0
    %v810 = vadd.f32 0.0, %v809
    %v811 = vpop.f32.mrb[0].mxu0
    %812 = vdwg.mxu0
    %v813 = vsel %vm193, %v265, -inf
    %814 = vmax.xlane.f32.xlu0 %v813
    %v815 = vpop.xlane.xlu0 %814
    %v816 = vsel %vm193, %v343, -inf
    %817 = vmax.xlane.f32.xlu0 %v816
    %v818 = vpop.xlane.xlu0 %817
    %v819 = vsel %vm193, %v421, -inf
    %820 = vmax.xlane.f32.xlu0 %v819
    %v821 = vpop.xlane.xlu0 %820
    %v822 = vsel %vm193, %v499, -inf
    %823 = vmax.xlane.f32.xlu0 %v822
    %v824 = vpop.xlane.xlu0 %823
    %v825 = vsel %vm193, %v576, -inf
    %826 = vmax.xlane.f32.xlu0 %v825
    %v827 = vpop.xlane.xlu0 %826
    %v828 = vsel %vm193, %v654, -inf
    %829 = vmax.xlane.f32.xlu0 %v828
    %v830 = vpop.xlane.xlu0 %829
    %v831 = vsel %vm193, %v732, -inf
    %832 = vmax.xlane.f32.xlu0 %v831
    %v833 = vpop.xlane.xlu0 %832
    %v834 = vsel %vm193, %v810, -inf
    %835 = vmax.xlane.f32.xlu0 %v834
    %v836 = vpop.xlane.xlu0 %835
    %v837 = vsub.f32 %v265, %v815
    %v838 = vsub.f32 %v343, %v818
    %v839 = vsub.f32 %v421, %v821
    %v840 = vsub.f32 %v499, %v824
    %v841 = vsub.f32 %v576, %v827
    %v842 = vsub.f32 %v654, %v830
    %v843 = vsub.f32 %v732, %v833
    %v844 = vsub.f32 %v810, %v836
    %v845 = vmul.f32 %v837, 1.442695
    %v846 = vpow.pop %v845
    %v847 = vmul.f32 %v838, 1.442695
    %v848 = vpow.pop %v847
    %v849 = vmul.f32 %v839, 1.442695
    %v850 = vpow.pop %v849
    %v851 = vmul.f32 %v840, 1.442695
    %v852 = vpow.pop %v851
    %v853 = vmul.f32 %v841, 1.442695
    %v854 = vpow.pop %v853
    %v855 = vmul.f32 %v842, 1.442695
    %v856 = vpow.pop %v855
    %v857 = vmul.f32 %v843, 1.442695
    %v858 = vpow.pop %v857
    %v859 = vmul.f32 %v844, 1.442695
    %v860 = vpow.pop %v859
    %v861 = vsel %vm193, %v846, 0.0
    %862 = vadd.xlane.f32.xlu0 %v861
    %v863 = vpop.xlane.xlu0 %862
    %v864 = vsel %vm193, %v848, 0.0
    %865 = vadd.xlane.f32.xlu0 %v864
    %v866 = vpop.xlane.xlu0 %865
    %v867 = vsel %vm193, %v850, 0.0
    %868 = vadd.xlane.f32.xlu0 %v867
    %v869 = vpop.xlane.xlu0 %868
    %v870 = vsel %vm193, %v852, 0.0
    %871 = vadd.xlane.f32.xlu0 %v870
    %v872 = vpop.xlane.xlu0 %871
    %v873 = vsel %vm193, %v854, 0.0
    %874 = vadd.xlane.f32.xlu0 %v873
    %v875 = vpop.xlane.xlu0 %874
    %v876 = vsel %vm193, %v856, 0.0
    %877 = vadd.xlane.f32.xlu0 %v876
    %v878 = vpop.xlane.xlu0 %877
    %v879 = vsel %vm193, %v858, 0.0
    %880 = vadd.xlane.f32.xlu0 %v879
    %v881 = vpop.xlane.xlu0 %880
    %v882 = vsel %vm193, %v860, 0.0
    %883 = vadd.xlane.f32.xlu0 %v882
    %v884 = vpop.xlane.xlu0 %883
    %v885 = vrcp.pop %v863
    %v886 = vrcp.pop %v866
    %v887 = vrcp.pop %v869
    %v888 = vrcp.pop %v872
    %v889 = vrcp.pop %v875
    %v890 = vrcp.pop %v878
    %v891 = vrcp.pop %v881
    %v892 = vrcp.pop %v884
    %v893 = vmul.f32 %v846, %v885
    %v894 = vmul.f32 %v848, %v886
    %v895 = vmul.f32 %v850, %v887
    %v896 = vmul.f32 %v852, %v888
    %v897 = vmul.f32 %v854, %v889
    %v898 = vmul.f32 %v856, %v890
    %v899 = vmul.f32 %v858, %v891
    %v900 = vmul.f32 %v860, %v892
    %901 = vrot.lane.b32.xlu0 %v182, 112
    %v902 = vpop.permute.xlu0 %901
    %v905 = vsel %vm193, %v893, 0
    %907 = vmatprep.subr.mxu0 0.0
    %908 = vmatpush1.msra.mxu0 %v902
    %909 = vmatprep.subr.mxu0 0.0
    %910 = vmatpush1.msra.mxu0 0.0
    %911 = vmatprep.subr.mxu0 0.0
    %912 = vmatpush1.msra.mxu0 0.0
    %913 = vmatprep.subr.mxu0 0.0
    %914 = vmatpush1.msra.mxu0 0.0
    %915 = vmatprep.subr.mxu0 0.0
    %916 = vmatpush1.msra.mxu0 0.0
    %917 = vmatprep.subr.mxu0 0.0
    %918 = vmatpush1.msra.mxu0 0.0
    %919 = vmatprep.subr.mxu0 0.0
    %920 = vmatpush1.msra.mxu0 0.0
    %921 = vmatprep.subr.mxu0 0.0
    %922 = vmatpush1.msra.mxu0 0.0
    %923 = vmatprep.subr.mxu0 0.0
    %924 = vmatpush1.msra.mxu0 0.0
    %925 = vmatprep.subr.mxu0 0.0
    %926 = vmatpush1.msra.mxu0 0.0
    %927 = vmatprep.subr.mxu0 0.0
    %928 = vmatpush1.msra.mxu0 0.0
    %929 = vmatprep.subr.mxu0 0.0
    %930 = vmatpush1.msra.mxu0 0.0
    %931 = vmatprep.subr.mxu0 0.0
    %932 = vmatpush1.msra.mxu0 0.0
    %933 = vmatprep.subr.mxu0 0.0
    %934 = vmatpush1.msra.mxu0 0.0
    %935 = vmatprep.subr.mxu0 0.0
    %936 = vmatpush1.msra.mxu0 0.0
    %937 = vmatprep.subr.mxu0 0.0
    %938 = vmatpush1.msra.mxu0 0.0
    %939 = vmatprep.subr.mxu0 0.0
    %940 = vmatpush1.msra.mxu0 0.0
    %941 = vmatprep.subr.mxu0 0.0
    %942 = vmatpush1.msra.mxu0 0.0
    %943 = vmatprep.subr.mxu0 0.0
    %944 = vmatpush1.msra.mxu0 0.0
    %945 = vmatprep.subr.mxu0 0.0
    %946 = vmatpush1.msra.mxu0 0.0
    %947 = vmatprep.subr.mxu0 0.0
    %948 = vmatpush1.msra.mxu0 0.0
    %949 = vmatprep.subr.mxu0 0.0
    %950 = vmatpush1.msra.mxu0 0.0
    %951 = vmatprep.subr.mxu0 0.0
    %952 = vmatpush1.msra.mxu0 0.0
    %953 = vmatprep.subr.mxu0 0.0
    %954 = vmatpush1.msra.mxu0 0.0
    %955 = vmatprep.subr.mxu0 0.0
    %956 = vmatpush1.msra.mxu0 0.0
    %957 = vmatprep.subr.mxu0 0.0
    %958 = vmatpush1.msra.mxu0 0.0
    %959 = vmatprep.subr.mxu0 0.0
    %960 = vmatpush1.msra.mxu0 0.0
    %961 = vmatprep.subr.mxu0 0.0
    %962 = vmatpush1.msra.mxu0 0.0
    %963 = vmatprep.subr.mxu0 0.0
    %964 = vmatpush1.msra.mxu0 0.0
    %965 = vmatprep.subr.mxu0 0.0
    %966 = vmatpush1.msra.mxu0 0.0
    %967 = vmatprep.subr.mxu0 0.0
    %968 = vmatpush1.msra.mxu0 0.0
    %969 = vmatprep.subr.mxu0 0.0
    %970 = vmatpush1.msra.mxu0 0.0
    %971 = vmatprep.mubr.f32.mxu0 0.0
    %972 = vmatmul.mubr.f32.gmra.mrb[0].mxu0 %v905
    %v973 = vpop.f32.mrb[0].mxu0
    %v974 = vadd.f32 0.0, %v973
    %v975 = vpop.f32.mrb[0].mxu0
    %976 = vdwg.mxu0
    %977 = vrot.lane.b32.xlu0 %v182, 88
    %v978 = vpop.permute.xlu0 %977
    %v981 = vsel %vm193, %v894, 0
    %983 = vmatprep.subr.mxu0 0.0
    %984 = vmatpush1.msra.mxu0 %v978
    %985 = vmatprep.subr.mxu0 0.0
    %986 = vmatpush1.msra.mxu0 0.0
    %987 = vmatprep.subr.mxu0 0.0
    %988 = vmatpush1.msra.mxu0 0.0
    %989 = vmatprep.subr.mxu0 0.0
    %990 = vmatpush1.msra.mxu0 0.0
    %991 = vmatprep.subr.mxu0 0.0
    %992 = vmatpush1.msra.mxu0 0.0
    %993 = vmatprep.subr.mxu0 0.0
    %994 = vmatpush1.msra.mxu0 0.0
    %995 = vmatprep.subr.mxu0 0.0
    %996 = vmatpush1.msra.mxu0 0.0
    %997 = vmatprep.subr.mxu0 0.0
    %998 = vmatpush1.msra.mxu0 0.0
    %999 = vmatprep.subr.mxu0 0.0
    %1000 = vmatpush1.msra.mxu0 0.0
    %1001 = vmatprep.subr.mxu0 0.0
    %1002 = vmatpush1.msra.mxu0 0.0
    %1003 = vmatprep.subr.mxu0 0.0
    %1004 = vmatpush1.msra.mxu0 0.0
    %1005 = vmatprep.subr.mxu0 0.0
    %1006 = vmatpush1.msra.mxu0 0.0
    %1007 = vmatprep.subr.mxu0 0.0
    %1008 = vmatpush1.msra.mxu0 0.0
    %1009 = vmatprep.subr.mxu0 0.0
    %1010 = vmatpush1.msra.mxu0 0.0
    %1011 = vmatprep.subr.mxu0 0.0
    %1012 = vmatpush1.msra.mxu0 0.0
    %1013 = vmatprep.subr.mxu0 0.0
    %1014 = vmatpush1.msra.mxu0 0.0
    %1015 = vmatprep.subr.mxu0 0.0
    %1016 = vmatpush1.msra.mxu0 0.0
    %1017 = vmatprep.subr.mxu0 0.0
    %1018 = vmatpush1.msra.mxu0 0.0
    %1019 = vmatprep.subr.mxu0 0.0
    %1020 = vmatpush1.msra.mxu0 0.0
    %1021 = vmatprep.subr.mxu0 0.0
    %1022 = vmatpush1.msra.mxu0 0.0
    %1023 = vmatprep.subr.mxu0 0.0
    %1024 = vmatpush1.msra.mxu0 0.0
    %1025 = vmatprep.subr.mxu0 0.0
    %1026 = vmatpush1.msra.mxu0 0.0
    %1027 = vmatprep.subr.mxu0 0.0
    %1028 = vmatpush1.msra.mxu0 0.0
    %1029 = vmatprep.subr.mxu0 0.0
    %1030 = vmatpush1.msra.mxu0 0.0
    %1031 = vmatprep.subr.mxu0 0.0
    %1032 = vmatpush1.msra.mxu0 0.0
    %1033 = vmatprep.subr.mxu0 0.0
    %1034 = vmatpush1.msra.mxu0 0.0
    %1035 = vmatprep.subr.mxu0 0.0
    %1036 = vmatpush1.msra.mxu0 0.0
    %1037 = vmatprep.subr.mxu0 0.0
    %1038 = vmatpush1.msra.mxu0 0.0
    %1039 = vmatprep.subr.mxu0 0.0
    %1040 = vmatpush1.msra.mxu0 0.0
    %1041 = vmatprep.subr.mxu0 0.0
    %1042 = vmatpush1.msra.mxu0 0.0
    %1043 = vmatprep.subr.mxu0 0.0
    %1044 = vmatpush1.msra.mxu0 0.0
    %1045 = vmatprep.subr.mxu0 0.0
    %1046 = vmatpush1.msra.mxu0 0.0
    %1047 = vmatprep.mubr.f32.mxu0 0.0
    %1048 = vmatmul.mubr.f32.gmra.mrb[0].mxu0 %v981
    %v1049 = vpop.f32.mrb[0].mxu0
    %v1050 = vadd.f32 0.0, %v1049
    %v1051 = vpop.f32.mrb[0].mxu0
    %1052 = vdwg.mxu0
    %1054 = vrot.lane.b32.xlu0 %v101, 32
    %v1055 = vpop.permute.xlu0 %1054
    %v1058 = vsel %vm193, %v1050, 0
    %1060 = vmatprep.subr.mxu0 0.0
    %1061 = vmatpush1.msra.mxu0 %v1055
    %1062 = vmatprep.subr.mxu0 0.0
    %1063 = vmatpush1.msra.mxu0 0.0
    %1064 = vmatprep.subr.mxu0 0.0
    %1065 = vmatpush1.msra.mxu0 0.0
    %1066 = vmatprep.subr.mxu0 0.0
    %1067 = vmatpush1.msra.mxu0 0.0
    %1068 = vmatprep.subr.mxu0 0.0
    %1069 = vmatpush1.msra.mxu0 0.0
    %1070 = vmatprep.subr.mxu0 0.0
    %1071 = vmatpush1.msra.mxu0 0.0
    %1072 = vmatprep.subr.mxu0 0.0
    %1073 = vmatpush1.msra.mxu0 0.0
    %1074 = vmatprep.subr.mxu0 0.0
    %1075 = vmatpush1.msra.mxu0 0.0
    %1076 = vmatprep.subr.mxu0 0.0
    %1077 = vmatpush1.msra.mxu0 0.0
    %1078 = vmatprep.subr.mxu0 0.0
    %1079 = vmatpush1.msra.mxu0 0.0
    %1080 = vmatprep.subr.mxu0 0.0
    %1081 = vmatpush1.msra.mxu0 0.0
    %1082 = vmatprep.subr.mxu0 0.0
    %1083 = vmatpush1.msra.mxu0 0.0
    %1084 = vmatprep.subr.mxu0 0.0
    %1085 = vmatpush1.msra.mxu0 0.0
    %1086 = vmatprep.subr.mxu0 0.0
    %1087 = vmatpush1.msra.mxu0 0.0
    %1088 = vmatprep.subr.mxu0 0.0
    %1089 = vmatpush1.msra.mxu0 0.0
    %1090 = vmatprep.subr.mxu0 0.0
    %1091 = vmatpush1.msra.mxu0 0.0
    %1092 = vmatprep.subr.mxu0 0.0
    %1093 = vmatpush1.msra.mxu0 0.0
    %1094 = vmatprep.subr.mxu0 0.0
    %1095 = vmatpush1.msra.mxu0 0.0
    %1096 = vmatprep.subr.mxu0 0.0
    %1097 = vmatpush1.msra.mxu0 0.0
    %1098 = vmatprep.subr.mxu0 0.0
    %1099 = vmatpush1.msra.mxu0 0.0
    %1100 = vmatprep.subr.mxu0 0.0
    %1101 = vmatpush1.msra.mxu0 0.0
    %1102 = vmatprep.subr.mxu0 0.0
    %1103 = vmatpush1.msra.mxu0 0.0
    %1104 = vmatprep.subr.mxu0 0.0
    %1105 = vmatpush1.msra.mxu0 0.0
    %1106 = vmatprep.subr.mxu0 0.0
    %1107 = vmatpush1.msra.mxu0 0.0
    %1108 = vmatprep.subr.mxu0 0.0
    %1109 = vmatpush1.msra.mxu0 0.0
    %1110 = vmatprep.subr.mxu0 0.0
    %1111 = vmatpush1.msra.mxu0 0.0
    %1112 = vmatprep.subr.mxu0 0.0
    %1113 = vmatpush1.msra.mxu0 0.0
    %1114 = vmatprep.subr.mxu0 0.0
    %1115 = vmatpush1.msra.mxu0 0.0
    %1116 = vmatprep.subr.mxu0 0.0
    %1117 = vmatpush1.msra.mxu0 0.0
    %1118 = vmatprep.subr.mxu0 0.0
    %1119 = vmatpush1.msra.mxu0 0.0
    %1120 = vmatprep.subr.mxu0 0.0
    %1121 = vmatpush1.msra.mxu0 0.0
    %1122 = vmatprep.subr.mxu0 0.0
    %1123 = vmatpush1.msra.mxu0 0.0
    %1124 = vmatprep.mubr.f32.mxu0 0.0
    %1125 = vmatmul.mubr.f32.gmra.mrb[0].mxu0 %v1058
    %v1126 = vpop.f32.mrb[0].mxu0
    %v1127 = vadd.f32 0.0, %v1126
    %v1128 = vpop.f32.mrb[0].mxu0
    %1129 = vdwg.mxu0
    %1131 = vrot.lane.b32.xlu0 %v100, 32
    %v1132 = vpop.permute.xlu0 %1131
    %v1135 = vsel %vm193, %v974, 0
    %1137 = vmatprep.subr.mxu0 0.0
    %1138 = vmatpush1.msra.mxu0 %v1132
    %1139 = vmatprep.subr.mxu0 0.0
    %1140 = vmatpush1.msra.mxu0 0.0
    %1141 = vmatprep.subr.mxu0 0.0
    %1142 = vmatpush1.msra.mxu0 0.0
    %1143 = vmatprep.subr.mxu0 0.0
    %1144 = vmatpush1.msra.mxu0 0.0
    %1145 = vmatprep.subr.mxu0 0.0
    %1146 = vmatpush1.msra.mxu0 0.0
    %1147 = vmatprep.subr.mxu0 0.0
    %1148 = vmatpush1.msra.mxu0 0.0
    %1149 = vmatprep.subr.mxu0 0.0
    %1150 = vmatpush1.msra.mxu0 0.0
    %1151 = vmatprep.subr.mxu0 0.0
    %1152 = vmatpush1.msra.mxu0 0.0
    %1153 = vmatprep.subr.mxu0 0.0
    %1154 = vmatpush1.msra.mxu0 0.0
    %1155 = vmatprep.subr.mxu0 0.0
    %1156 = vmatpush1.msra.mxu0 0.0
    %1157 = vmatprep.subr.mxu0 0.0
    %1158 = vmatpush1.msra.mxu0 0.0
    %1159 = vmatprep.subr.mxu0 0.0
    %1160 = vmatpush1.msra.mxu0 0.0
    %1161 = vmatprep.subr.mxu0 0.0
    %1162 = vmatpush1.msra.mxu0 0.0
    %1163 = vmatprep.subr.mxu0 0.0
    %1164 = vmatpush1.msra.mxu0 0.0
    %1165 = vmatprep.subr.mxu0 0.0
    %1166 = vmatpush1.msra.mxu0 0.0
    %1167 = vmatprep.subr.mxu0 0.0
    %1168 = vmatpush1.msra.mxu0 0.0
    %1169 = vmatprep.subr.mxu0 0.0
    %1170 = vmatpush1.msra.mxu0 0.0
    %1171 = vmatprep.subr.mxu0 0.0
    %1172 = vmatpush1.msra.mxu0 0.0
    %1173 = vmatprep.subr.mxu0 0.0
    %1174 = vmatpush1.msra.mxu0 0.0
    %1175 = vmatprep.subr.mxu0 0.0
    %1176 = vmatpush1.msra.mxu0 0.0
    %1177 = vmatprep.subr.mxu0 0.0
    %1178 = vmatpush1.msra.mxu0 0.0
    %1179 = vmatprep.subr.mxu0 0.0
    %1180 = vmatpush1.msra.mxu0 0.0
    %1181 = vmatprep.subr.mxu0 0.0
    %1182 = vmatpush1.msra.mxu0 0.0
    %1183 = vmatprep.subr.mxu0 0.0
    %1184 = vmatpush1.msra.mxu0 0.0
    %1185 = vmatprep.subr.mxu0 0.0
    %1186 = vmatpush1.msra.mxu0 0.0
    %1187 = vmatprep.subr.mxu0 0.0
    %1188 = vmatpush1.msra.mxu0 0.0
    %1189 = vmatprep.subr.mxu0 0.0
    %1190 = vmatpush1.msra.mxu0 0.0
    %1191 = vmatprep.subr.mxu0 0.0
    %1192 = vmatpush1.msra.mxu0 0.0
    %1193 = vmatprep.subr.mxu0 0.0
    %1194 = vmatpush1.msra.mxu0 0.0
    %1195 = vmatprep.subr.mxu0 0.0
    %1196 = vmatpush1.msra.mxu0 0.0
    %1197 = vmatprep.subr.mxu0 0.0
    %1198 = vmatpush1.msra.mxu0 0.0
    %1199 = vmatprep.subr.mxu0 0.0
    %1200 = vmatpush1.msra.mxu0 0.0
    %1201 = vmatprep.mubr.f32.mxu0 0.0
    %1202 = vmatmul.mubr.f32.gmra.mrb[0].mxu0 %v1135
    %v1203 = vpop.f32.mrb[0].mxu0
    %v1204 = vadd.f32 %v1127, %v1203
    %v1205 = vpop.f32.mrb[0].mxu0
    %1206 = vdwg.mxu0
    %1207 = vrot.lane.b32.xlu0 %v182, 64
    %v1208 = vpop.permute.xlu0 %1207
    %v1211 = vsel %vm193, %v895, 0
    %1213 = vmatprep.subr.mxu0 0.0
    %1214 = vmatpush1.msra.mxu0 %v1208
    %1215 = vmatprep.subr.mxu0 0.0
    %1216 = vmatpush1.msra.mxu0 0.0
    %1217 = vmatprep.subr.mxu0 0.0
    %1218 = vmatpush1.msra.mxu0 0.0
    %1219 = vmatprep.subr.mxu0 0.0
    %1220 = vmatpush1.msra.mxu0 0.0
    %1221 = vmatprep.subr.mxu0 0.0
    %1222 = vmatpush1.msra.mxu0 0.0
    %1223 = vmatprep.subr.mxu0 0.0
    %1224 = vmatpush1.msra.mxu0 0.0
    %1225 = vmatprep.subr.mxu0 0.0
    %1226 = vmatpush1.msra.mxu0 0.0
    %1227 = vmatprep.subr.mxu0 0.0
    %1228 = vmatpush1.msra.mxu0 0.0
    %1229 = vmatprep.subr.mxu0 0.0
    %1230 = vmatpush1.msra.mxu0 0.0
    %1231 = vmatprep.subr.mxu0 0.0
    %1232 = vmatpush1.msra.mxu0 0.0
    %1233 = vmatprep.subr.mxu0 0.0
    %1234 = vmatpush1.msra.mxu0 0.0
    %1235 = vmatprep.subr.mxu0 0.0
    %1236 = vmatpush1.msra.mxu0 0.0
    %1237 = vmatprep.subr.mxu0 0.0
    %1238 = vmatpush1.msra.mxu0 0.0
    %1239 = vmatprep.subr.mxu0 0.0
    %1240 = vmatpush1.msra.mxu0 0.0
    %1241 = vmatprep.subr.mxu0 0.0
    %1242 = vmatpush1.msra.mxu0 0.0
    %1243 = vmatprep.subr.mxu0 0.0
    %1244 = vmatpush1.msra.mxu0 0.0
    %1245 = vmatprep.subr.mxu0 0.0
    %1246 = vmatpush1.msra.mxu0 0.0
    %1247 = vmatprep.subr.mxu0 0.0
    %1248 = vmatpush1.msra.mxu0 0.0
    %1249 = vmatprep.subr.mxu0 0.0
    %1250 = vmatpush1.msra.mxu0 0.0
    %1251 = vmatprep.subr.mxu0 0.0
    %1252 = vmatpush1.msra.mxu0 0.0
    %1253 = vmatprep.subr.mxu0 0.0
    %1254 = vmatpush1.msra.mxu0 0.0
    %1255 = vmatprep.subr.mxu0 0.0
    %1256 = vmatpush1.msra.mxu0 0.0
    %1257 = vmatprep.subr.mxu0 0.0
    %1258 = vmatpush1.msra.mxu0 0.0
    %1259 = vmatprep.subr.mxu0 0.0
    %1260 = vmatpush1.msra.mxu0 0.0
    %1261 = vmatprep.subr.mxu0 0.0
    %1262 = vmatpush1.msra.mxu0 0.0
    %1263 = vmatprep.subr.mxu0 0.0
    %1264 = vmatpush1.msra.mxu0 0.0
    %1265 = vmatprep.subr.mxu0 0.0
    %1266 = vmatpush1.msra.mxu0 0.0
    %1267 = vmatprep.subr.mxu0 0.0
    %1268 = vmatpush1.msra.mxu0 0.0
    %1269 = vmatprep.subr.mxu0 0.0
    %1270 = vmatpush1.msra.mxu0 0.0
    %1271 = vmatprep.subr.mxu0 0.0
    %1272 = vmatpush1.msra.mxu0 0.0
    %1273 = vmatprep.subr.mxu0 0.0
    %1274 = vmatpush1.msra.mxu0 0.0
    %1275 = vmatprep.subr.mxu0 0.0
    %1276 = vmatpush1.msra.mxu0 0.0
    %1277 = vmatprep.mubr.f32.mxu0 0.0
    %1278 = vmatmul.mubr.f32.gmra.mrb[0].mxu0 %v1211
    %v1279 = vpop.f32.mrb[0].mxu0
    %v1280 = vadd.f32 0.0, %v1279
    %v1281 = vpop.f32.mrb[0].mxu0
    %1282 = vdwg.mxu0
    %1284 = vrot.lane.b32.xlu0 %v102, 32
    %v1285 = vpop.permute.xlu0 %1284
    %v1288 = vsel %vm193, %v1280, 0
    %1290 = vmatprep.subr.mxu0 0.0
    %1291 = vmatpush1.msra.mxu0 %v1285
    %1292 = vmatprep.subr.mxu0 0.0
    %1293 = vmatpush1.msra.mxu0 0.0
    %1294 = vmatprep.subr.mxu0 0.0
    %1295 = vmatpush1.msra.mxu0 0.0
    %1296 = vmatprep.subr.mxu0 0.0
    %1297 = vmatpush1.msra.mxu0 0.0
    %1298 = vmatprep.subr.mxu0 0.0
    %1299 = vmatpush1.msra.mxu0 0.0
    %1300 = vmatprep.subr.mxu0 0.0
    %1301 = vmatpush1.msra.mxu0 0.0
    %1302 = vmatprep.subr.mxu0 0.0
    %1303 = vmatpush1.msra.mxu0 0.0
    %1304 = vmatprep.subr.mxu0 0.0
    %1305 = vmatpush1.msra.mxu0 0.0
    %1306 = vmatprep.subr.mxu0 0.0
    %1307 = vmatpush1.msra.mxu0 0.0
    %1308 = vmatprep.subr.mxu0 0.0
    %1309 = vmatpush1.msra.mxu0 0.0
    %1310 = vmatprep.subr.mxu0 0.0
    %1311 = vmatpush1.msra.mxu0 0.0
    %1312 = vmatprep.subr.mxu0 0.0
    %1313 = vmatpush1.msra.mxu0 0.0
    %1314 = vmatprep.subr.mxu0 0.0
    %1315 = vmatpush1.msra.mxu0 0.0
    %1316 = vmatprep.subr.mxu0 0.0
    %1317 = vmatpush1.msra.mxu0 0.0
    %1318 = vmatprep.subr.mxu0 0.0
    %1319 = vmatpush1.msra.mxu0 0.0
    %1320 = vmatprep.subr.mxu0 0.0
    %1321 = vmatpush1.msra.mxu0 0.0
    %1322 = vmatprep.subr.mxu0 0.0
    %1323 = vmatpush1.msra.mxu0 0.0
    %1324 = vmatprep.subr.mxu0 0.0
    %1325 = vmatpush1.msra.mxu0 0.0
    %1326 = vmatprep.subr.mxu0 0.0
    %1327 = vmatpush1.msra.mxu0 0.0
    %1328 = vmatprep.subr.mxu0 0.0
    %1329 = vmatpush1.msra.mxu0 0.0
    %1330 = vmatprep.subr.mxu0 0.0
    %1331 = vmatpush1.msra.mxu0 0.0
    %1332 = vmatprep.subr.mxu0 0.0
    %1333 = vmatpush1.msra.mxu0 0.0
    %1334 = vmatprep.subr.mxu0 0.0
    %1335 = vmatpush1.msra.mxu0 0.0
    %1336 = vmatprep.subr.mxu0 0.0
    %1337 = vmatpush1.msra.mxu0 0.0
    %1338 = vmatprep.subr.mxu0 0.0
    %1339 = vmatpush1.msra.mxu0 0.0
    %1340 = vmatprep.subr.mxu0 0.0
    %1341 = vmatpush1.msra.mxu0 0.0
    %1342 = vmatprep.subr.mxu0 0.0
    %1343 = vmatpush1.msra.mxu0 0.0
    %1344 = vmatprep.subr.mxu0 0.0
    %1345 = vmatpush1.msra.mxu0 0.0
    %1346 = vmatprep.subr.mxu0 0.0
    %1347 = vmatpush1.msra.mxu0 0.0
    %1348 = vmatprep.subr.mxu0 0.0
    %1349 = vmatpush1.msra.mxu0 0.0
    %1350 = vmatprep.subr.mxu0 0.0
    %1351 = vmatpush1.msra.mxu0 0.0
    %1352 = vmatprep.subr.mxu0 0.0
    %1353 = vmatpush1.msra.mxu0 0.0
    %1354 = vmatprep.mubr.f32.mxu0 0.0
    %1355 = vmatmul.mubr.f32.gmra.mrb[0].mxu0 %v1288
    %v1356 = vpop.f32.mrb[0].mxu0
    %v1357 = vadd.f32 0.0, %v1356
    %v1358 = vpop.f32.mrb[0].mxu0
    %1359 = vdwg.mxu0
    %v1360 = vadd.f32 %v1204, %v1357
    %1361 = vrot.lane.b32.xlu0 %v182, 40
    %v1362 = vpop.permute.xlu0 %1361
    %v1365 = vsel %vm193, %v896, 0
    %1367 = vmatprep.subr.mxu0 0.0
    %1368 = vmatpush1.msra.mxu0 %v1362
    %1369 = vmatprep.subr.mxu0 0.0
    %1370 = vmatpush1.msra.mxu0 0.0
    %1371 = vmatprep.subr.mxu0 0.0
    %1372 = vmatpush1.msra.mxu0 0.0
    %1373 = vmatprep.subr.mxu0 0.0
    %1374 = vmatpush1.msra.mxu0 0.0
    %1375 = vmatprep.subr.mxu0 0.0
    %1376 = vmatpush1.msra.mxu0 0.0
    %1377 = vmatprep.subr.mxu0 0.0
    %1378 = vmatpush1.msra.mxu0 0.0
    %1379 = vmatprep.subr.mxu0 0.0
    %1380 = vmatpush1.msra.mxu0 0.0
    %1381 = vmatprep.subr.mxu0 0.0
    %1382 = vmatpush1.msra.mxu0 0.0
    %1383 = vmatprep.subr.mxu0 0.0
    %1384 = vmatpush1.msra.mxu0 0.0
    %1385 = vmatprep.subr.mxu0 0.0
    %1386 = vmatpush1.msra.mxu0 0.0
    %1387 = vmatprep.subr.mxu0 0.0
    %1388 = vmatpush1.msra.mxu0 0.0
    %1389 = vmatprep.subr.mxu0 0.0
    %1390 = vmatpush1.msra.mxu0 0.0
    %1391 = vmatprep.subr.mxu0 0.0
    %1392 = vmatpush1.msra.mxu0 0.0
    %1393 = vmatprep.subr.mxu0 0.0
    %1394 = vmatpush1.msra.mxu0 0.0
    %1395 = vmatprep.subr.mxu0 0.0
    %1396 = vmatpush1.msra.mxu0 0.0
    %1397 = vmatprep.subr.mxu0 0.0
    %1398 = vmatpush1.msra.mxu0 0.0
    %1399 = vmatprep.subr.mxu0 0.0
    %1400 = vmatpush1.msra.mxu0 0.0
    %1401 = vmatprep.subr.mxu0 0.0
    %1402 = vmatpush1.msra.mxu0 0.0
    %1403 = vmatprep.subr.mxu0 0.0
    %1404 = vmatpush1.msra.mxu0 0.0
    %1405 = vmatprep.subr.mxu0 0.0
    %1406 = vmatpush1.msra.mxu0 0.0
    %1407 = vmatprep.subr.mxu0 0.0
    %1408 = vmatpush1.msra.mxu0 0.0
    %1409 = vmatprep.subr.mxu0 0.0
    %1410 = vmatpush1.msra.mxu0 0.0
    %1411 = vmatprep.subr.mxu0 0.0
    %1412 = vmatpush1.msra.mxu0 0.0
    %1413 = vmatprep.subr.mxu0 0.0
    %1414 = vmatpush1.msra.mxu0 0.0
    %1415 = vmatprep.subr.mxu0 0.0
    %1416 = vmatpush1.msra.mxu0 0.0
    %1417 = vmatprep.subr.mxu0 0.0
    %1418 = vmatpush1.msra.mxu0 0.0
    %1419 = vmatprep.subr.mxu0 0.0
    %1420 = vmatpush1.msra.mxu0 0.0
    %1421 = vmatprep.subr.mxu0 0.0
    %1422 = vmatpush1.msra.mxu0 0.0
    %1423 = vmatprep.subr.mxu0 0.0
    %1424 = vmatpush1.msra.mxu0 0.0
    %1425 = vmatprep.subr.mxu0 0.0
    %1426 = vmatpush1.msra.mxu0 0.0
    %1427 = vmatprep.subr.mxu0 0.0
    %1428 = vmatpush1.msra.mxu0 0.0
    %1429 = vmatprep.subr.mxu0 0.0
    %1430 = vmatpush1.msra.mxu0 0.0
    %1431 = vmatprep.mubr.f32.mxu0 0.0
    %1432 = vmatmul.mubr.f32.gmra.mrb[0].mxu0 %v1365
    %v1433 = vpop.f32.mrb[0].mxu0
    %v1434 = vadd.f32 0.0, %v1433
    %v1435 = vpop.f32.mrb[0].mxu0
    %1436 = vdwg.mxu0
    %1438 = vrot.lane.b32.xlu0 %v103, 32
    %v1439 = vpop.permute.xlu0 %1438
    %v1442 = vsel %vm193, %v1434, 0
    %1444 = vmatprep.subr.mxu0 0.0
    %1445 = vmatpush1.msra.mxu0 %v1439
    %1446 = vmatprep.subr.mxu0 0.0
    %1447 = vmatpush1.msra.mxu0 0.0
    %1448 = vmatprep.subr.mxu0 0.0
    %1449 = vmatpush1.msra.mxu0 0.0
    %1450 = vmatprep.subr.mxu0 0.0
    %1451 = vmatpush1.msra.mxu0 0.0
    %1452 = vmatprep.subr.mxu0 0.0
    %1453 = vmatpush1.msra.mxu0 0.0
    %1454 = vmatprep.subr.mxu0 0.0
    %1455 = vmatpush1.msra.mxu0 0.0
    %1456 = vmatprep.subr.mxu0 0.0
    %1457 = vmatpush1.msra.mxu0 0.0
    %1458 = vmatprep.subr.mxu0 0.0
    %1459 = vmatpush1.msra.mxu0 0.0
    %1460 = vmatprep.subr.mxu0 0.0
    %1461 = vmatpush1.msra.mxu0 0.0
    %1462 = vmatprep.subr.mxu0 0.0
    %1463 = vmatpush1.msra.mxu0 0.0
    %1464 = vmatprep.subr.mxu0 0.0
    %1465 = vmatpush1.msra.mxu0 0.0
    %1466 = vmatprep.subr.mxu0 0.0
    %1467 = vmatpush1.msra.mxu0 0.0
    %1468 = vmatprep.subr.mxu0 0.0
    %1469 = vmatpush1.msra.mxu0 0.0
    %1470 = vmatprep.subr.mxu0 0.0
    %1471 = vmatpush1.msra.mxu0 0.0
    %1472 = vmatprep.subr.mxu0 0.0
    %1473 = vmatpush1.msra.mxu0 0.0
    %1474 = vmatprep.subr.mxu0 0.0
    %1475 = vmatpush1.msra.mxu0 0.0
    %1476 = vmatprep.subr.mxu0 0.0
    %1477 = vmatpush1.msra.mxu0 0.0
    %1478 = vmatprep.subr.mxu0 0.0
    %1479 = vmatpush1.msra.mxu0 0.0
    %1480 = vmatprep.subr.mxu0 0.0
    %1481 = vmatpush1.msra.mxu0 0.0
    %1482 = vmatprep.subr.mxu0 0.0
    %1483 = vmatpush1.msra.mxu0 0.0
    %1484 = vmatprep.subr.mxu0 0.0
    %1485 = vmatpush1.msra.mxu0 0.0
    %1486 = vmatprep.subr.mxu0 0.0
    %1487 = vmatpush1.msra.mxu0 0.0
    %1488 = vmatprep.subr.mxu0 0.0
    %1489 = vmatpush1.msra.mxu0 0.0
    %1490 = vmatprep.subr.mxu0 0.0
    %1491 = vmatpush1.msra.mxu0 0.0
    %1492 = vmatprep.subr.mxu0 0.0
    %1493 = vmatpush1.msra.mxu0 0.0
    %1494 = vmatprep.subr.mxu0 0.0
    %1495 = vmatpush1.msra.mxu0 0.0
    %1496 = vmatprep.subr.mxu0 0.0
    %1497 = vmatpush1.msra.mxu0 0.0
    %1498 = vmatprep.subr.mxu0 0.0
    %1499 = vmatpush1.msra.mxu0 0.0
    %1500 = vmatprep.subr.mxu0 0.0
    %1501 = vmatpush1.msra.mxu0 0.0
    %1502 = vmatprep.subr.mxu0 0.0
    %1503 = vmatpush1.msra.mxu0 0.0
    %1504 = vmatprep.subr.mxu0 0.0
    %1505 = vmatpush1.msra.mxu0 0.0
    %1506 = vmatprep.subr.mxu0 0.0
    %1507 = vmatpush1.msra.mxu0 0.0
    %1508 = vmatprep.mubr.f32.mxu0 0.0
    %1509 = vmatmul.mubr.f32.gmra.mrb[0].mxu0 %v1442
    %v1510 = vpop.f32.mrb[0].mxu0
    %v1511 = vadd.f32 0.0, %v1510
    %v1512 = vpop.f32.mrb[0].mxu0
    %1513 = vdwg.mxu0
    %v1514 = vadd.f32 %v1360, %v1511
    %1515 = vrot.lane.b32.xlu0 %v187, 112
    %v1516 = vpop.permute.xlu0 %1515
    %v1519 = vsel %vm193, %v897, 0
    %1521 = vmatprep.subr.mxu0 0.0
    %1522 = vmatpush1.msra.mxu0 %v1516
    %1523 = vmatprep.subr.mxu0 0.0
    %1524 = vmatpush1.msra.mxu0 0.0
    %1525 = vmatprep.subr.mxu0 0.0
    %1526 = vmatpush1.msra.mxu0 0.0
    %1527 = vmatprep.subr.mxu0 0.0
    %1528 = vmatpush1.msra.mxu0 0.0
    %1529 = vmatprep.subr.mxu0 0.0
    %1530 = vmatpush1.msra.mxu0 0.0
    %1531 = vmatprep.subr.mxu0 0.0
    %1532 = vmatpush1.msra.mxu0 0.0
    %1533 = vmatprep.subr.mxu0 0.0
    %1534 = vmatpush1.msra.mxu0 0.0
    %1535 = vmatprep.subr.mxu0 0.0
    %1536 = vmatpush1.msra.mxu0 0.0
    %1537 = vmatprep.subr.mxu0 0.0
    %1538 = vmatpush1.msra.mxu0 0.0
    %1539 = vmatprep.subr.mxu0 0.0
    %1540 = vmatpush1.msra.mxu0 0.0
    %1541 = vmatprep.subr.mxu0 0.0
    %1542 = vmatpush1.msra.mxu0 0.0
    %1543 = vmatprep.subr.mxu0 0.0
    %1544 = vmatpush1.msra.mxu0 0.0
    %1545 = vmatprep.subr.mxu0 0.0
    %1546 = vmatpush1.msra.mxu0 0.0
    %1547 = vmatprep.subr.mxu0 0.0
    %1548 = vmatpush1.msra.mxu0 0.0
    %1549 = vmatprep.subr.mxu0 0.0
    %1550 = vmatpush1.msra.mxu0 0.0
    %1551 = vmatprep.subr.mxu0 0.0
    %1552 = vmatpush1.msra.mxu0 0.0
    %1553 = vmatprep.subr.mxu0 0.0
    %1554 = vmatpush1.msra.mxu0 0.0
    %1555 = vmatprep.subr.mxu0 0.0
    %1556 = vmatpush1.msra.mxu0 0.0
    %1557 = vmatprep.subr.mxu0 0.0
    %1558 = vmatpush1.msra.mxu0 0.0
    %1559 = vmatprep.subr.mxu0 0.0
    %1560 = vmatpush1.msra.mxu0 0.0
    %1561 = vmatprep.subr.mxu0 0.0
    %1562 = vmatpush1.msra.mxu0 0.0
    %1563 = vmatprep.subr.mxu0 0.0
    %1564 = vmatpush1.msra.mxu0 0.0
    %1565 = vmatprep.subr.mxu0 0.0
    %1566 = vmatpush1.msra.mxu0 0.0
    %1567 = vmatprep.subr.mxu0 0.0
    %1568 = vmatpush1.msra.mxu0 0.0
    %1569 = vmatprep.subr.mxu0 0.0
    %1570 = vmatpush1.msra.mxu0 0.0
    %1571 = vmatprep.subr.mxu0 0.0
    %1572 = vmatpush1.msra.mxu0 0.0
    %1573 = vmatprep.subr.mxu0 0.0
    %1574 = vmatpush1.msra.mxu0 0.0
    %1575 = vmatprep.subr.mxu0 0.0
    %1576 = vmatpush1.msra.mxu0 0.0
    %1577 = vmatprep.subr.mxu0 0.0
    %1578 = vmatpush1.msra.mxu0 0.0
    %1579 = vmatprep.subr.mxu0 0.0
    %1580 = vmatpush1.msra.mxu0 0.0
    %1581 = vmatprep.subr.mxu0 0.0
    %1582 = vmatpush1.msra.mxu0 0.0
    %1583 = vmatprep.subr.mxu0 0.0
    %1584 = vmatpush1.msra.mxu0 0.0
    %1585 = vmatprep.mubr.f32.mxu0 0.0
    %1586 = vmatmul.mubr.f32.gmra.mrb[0].mxu0 %v1519
    %v1587 = vpop.f32.mrb[0].mxu0
    %v1588 = vadd.f32 0.0, %v1587
    %v1589 = vpop.f32.mrb[0].mxu0
    %1590 = vdwg.mxu0
    %1591 = vrot.lane.b32.xlu0 %v187, 88
    %v1592 = vpop.permute.xlu0 %1591
    %v1595 = vsel %vm193, %v898, 0
    %1597 = vmatprep.subr.mxu0 0.0
    %1598 = vmatpush1.msra.mxu0 %v1592
    %1599 = vmatprep.subr.mxu0 0.0
    %1600 = vmatpush1.msra.mxu0 0.0
    %1601 = vmatprep.subr.mxu0 0.0
    %1602 = vmatpush1.msra.mxu0 0.0
    %1603 = vmatprep.subr.mxu0 0.0
    %1604 = vmatpush1.msra.mxu0 0.0
    %1605 = vmatprep.subr.mxu0 0.0
    %1606 = vmatpush1.msra.mxu0 0.0
    %1607 = vmatprep.subr.mxu0 0.0
    %1608 = vmatpush1.msra.mxu0 0.0
    %1609 = vmatprep.subr.mxu0 0.0
    %1610 = vmatpush1.msra.mxu0 0.0
    %1611 = vmatprep.subr.mxu0 0.0
    %1612 = vmatpush1.msra.mxu0 0.0
    %1613 = vmatprep.subr.mxu0 0.0
    %1614 = vmatpush1.msra.mxu0 0.0
    %1615 = vmatprep.subr.mxu0 0.0
    %1616 = vmatpush1.msra.mxu0 0.0
    %1617 = vmatprep.subr.mxu0 0.0
    %1618 = vmatpush1.msra.mxu0 0.0
    %1619 = vmatprep.subr.mxu0 0.0
    %1620 = vmatpush1.msra.mxu0 0.0
    %1621 = vmatprep.subr.mxu0 0.0
    %1622 = vmatpush1.msra.mxu0 0.0
    %1623 = vmatprep.subr.mxu0 0.0
    %1624 = vmatpush1.msra.mxu0 0.0
    %1625 = vmatprep.subr.mxu0 0.0
    %1626 = vmatpush1.msra.mxu0 0.0
    %1627 = vmatprep.subr.mxu0 0.0
    %1628 = vmatpush1.msra.mxu0 0.0
    %1629 = vmatprep.subr.mxu0 0.0
    %1630 = vmatpush1.msra.mxu0 0.0
    %1631 = vmatprep.subr.mxu0 0.0
    %1632 = vmatpush1.msra.mxu0 0.0
    %1633 = vmatprep.subr.mxu0 0.0
    %1634 = vmatpush1.msra.mxu0 0.0
    %1635 = vmatprep.subr.mxu0 0.0
    %1636 = vmatpush1.msra.mxu0 0.0
    %1637 = vmatprep.subr.mxu0 0.0
    %1638 = vmatpush1.msra.mxu0 0.0
    %1639 = vmatprep.subr.mxu0 0.0
    %1640 = vmatpush1.msra.mxu0 0.0
    %1641 = vmatprep.subr.mxu0 0.0
    %1642 = vmatpush1.msra.mxu0 0.0
    %1643 = vmatprep.subr.mxu0 0.0
    %1644 = vmatpush1.msra.mxu0 0.0
    %1645 = vmatprep.subr.mxu0 0.0
    %1646 = vmatpush1.msra.mxu0 0.0
    %1647 = vmatprep.subr.mxu0 0.0
    %1648 = vmatpush1.msra.mxu0 0.0
    %1649 = vmatprep.subr.mxu0 0.0
    %1650 = vmatpush1.msra.mxu0 0.0
    %1651 = vmatprep.subr.mxu0 0.0
    %1652 = vmatpush1.msra.mxu0 0.0
    %1653 = vmatprep.subr.mxu0 0.0
    %1654 = vmatpush1.msra.mxu0 0.0
    %1655 = vmatprep.subr.mxu0 0.0
    %1656 = vmatpush1.msra.mxu0 0.0
    %1657 = vmatprep.subr.mxu0 0.0
    %1658 = vmatpush1.msra.mxu0 0.0
    %1659 = vmatprep.subr.mxu0 0.0
    %1660 = vmatpush1.msra.mxu0 0.0
    %1661 = vmatprep.mubr.f32.mxu0 0.0
    %1662 = vmatmul.mubr.f32.gmra.mrb[0].mxu0 %v1595
    %v1663 = vpop.f32.mrb[0].mxu0
    %v1664 = vadd.f32 0.0, %v1663
    %v1665 = vpop.f32.mrb[0].mxu0
    %1666 = vdwg.mxu0
    %v1668 = vsel %vm193, %v1664, 0
    %1670 = vmatprep.subr.mxu0 0.0
    %1671 = vmatpush1.msra.mxu0 %v1055
    %1672 = vmatprep.subr.mxu0 0.0
    %1673 = vmatpush1.msra.mxu0 0.0
    %1674 = vmatprep.subr.mxu0 0.0
    %1675 = vmatpush1.msra.mxu0 0.0
    %1676 = vmatprep.subr.mxu0 0.0
    %1677 = vmatpush1.msra.mxu0 0.0
    %1678 = vmatprep.subr.mxu0 0.0
    %1679 = vmatpush1.msra.mxu0 0.0
    %1680 = vmatprep.subr.mxu0 0.0
    %1681 = vmatpush1.msra.mxu0 0.0
    %1682 = vmatprep.subr.mxu0 0.0
    %1683 = vmatpush1.msra.mxu0 0.0
    %1684 = vmatprep.subr.mxu0 0.0
    %1685 = vmatpush1.msra.mxu0 0.0
    %1686 = vmatprep.subr.mxu0 0.0
    %1687 = vmatpush1.msra.mxu0 0.0
    %1688 = vmatprep.subr.mxu0 0.0
    %1689 = vmatpush1.msra.mxu0 0.0
    %1690 = vmatprep.subr.mxu0 0.0
    %1691 = vmatpush1.msra.mxu0 0.0
    %1692 = vmatprep.subr.mxu0 0.0
    %1693 = vmatpush1.msra.mxu0 0.0
    %1694 = vmatprep.subr.mxu0 0.0
    %1695 = vmatpush1.msra.mxu0 0.0
    %1696 = vmatprep.subr.mxu0 0.0
    %1697 = vmatpush1.msra.mxu0 0.0
    %1698 = vmatprep.subr.mxu0 0.0
    %1699 = vmatpush1.msra.mxu0 0.0
    %1700 = vmatprep.subr.mxu0 0.0
    %1701 = vmatpush1.msra.mxu0 0.0
    %1702 = vmatprep.subr.mxu0 0.0
    %1703 = vmatpush1.msra.mxu0 0.0
    %1704 = vmatprep.subr.mxu0 0.0
    %1705 = vmatpush1.msra.mxu0 0.0
    %1706 = vmatprep.subr.mxu0 0.0
    %1707 = vmatpush1.msra.mxu0 0.0
    %1708 = vmatprep.subr.mxu0 0.0
    %1709 = vmatpush1.msra.mxu0 0.0
    %1710 = vmatprep.subr.mxu0 0.0
    %1711 = vmatpush1.msra.mxu0 0.0
    %1712 = vmatprep.subr.mxu0 0.0
    %1713 = vmatpush1.msra.mxu0 0.0
    %1714 = vmatprep.subr.mxu0 0.0
    %1715 = vmatpush1.msra.mxu0 0.0
    %1716 = vmatprep.subr.mxu0 0.0
    %1717 = vmatpush1.msra.mxu0 0.0
    %1718 = vmatprep.subr.mxu0 0.0
    %1719 = vmatpush1.msra.mxu0 0.0
    %1720 = vmatprep.subr.mxu0 0.0
    %1721 = vmatpush1.msra.mxu0 0.0
    %1722 = vmatprep.subr.mxu0 0.0
    %1723 = vmatpush1.msra.mxu0 0.0
    %1724 = vmatprep.subr.mxu0 0.0
    %1725 = vmatpush1.msra.mxu0 0.0
    %1726 = vmatprep.subr.mxu0 0.0
    %1727 = vmatpush1.msra.mxu0 0.0
    %1728 = vmatprep.subr.mxu0 0.0
    %1729 = vmatpush1.msra.mxu0 0.0
    %1730 = vmatprep.subr.mxu0 0.0
    %1731 = vmatpush1.msra.mxu0 0.0
    %1732 = vmatprep.subr.mxu0 0.0
    %1733 = vmatpush1.msra.mxu0 0.0
    %1734 = vmatprep.mubr.f32.mxu0 0.0
    %1735 = vmatmul.mubr.f32.gmra.mrb[0].mxu0 %v1668
    %v1736 = vpop.f32.mrb[0].mxu0
    %v1737 = vadd.f32 0.0, %v1736
    %v1738 = vpop.f32.mrb[0].mxu0
    %1739 = vdwg.mxu0
    %v1741 = vsel %vm193, %v1588, 0
    %1743 = vmatprep.subr.mxu0 0.0
    %1744 = vmatpush1.msra.mxu0 %v1132
    %1745 = vmatprep.subr.mxu0 0.0
    %1746 = vmatpush1.msra.mxu0 0.0
    %1747 = vmatprep.subr.mxu0 0.0
    %1748 = vmatpush1.msra.mxu0 0.0
    %1749 = vmatprep.subr.mxu0 0.0
    %1750 = vmatpush1.msra.mxu0 0.0
    %1751 = vmatprep.subr.mxu0 0.0
    %1752 = vmatpush1.msra.mxu0 0.0
    %1753 = vmatprep.subr.mxu0 0.0
    %1754 = vmatpush1.msra.mxu0 0.0
    %1755 = vmatprep.subr.mxu0 0.0
    %1756 = vmatpush1.msra.mxu0 0.0
    %1757 = vmatprep.subr.mxu0 0.0
    %1758 = vmatpush1.msra.mxu0 0.0
    %1759 = vmatprep.subr.mxu0 0.0
    %1760 = vmatpush1.msra.mxu0 0.0
    %1761 = vmatprep.subr.mxu0 0.0
    %1762 = vmatpush1.msra.mxu0 0.0
    %1763 = vmatprep.subr.mxu0 0.0
    %1764 = vmatpush1.msra.mxu0 0.0
    %1765 = vmatprep.subr.mxu0 0.0
    %1766 = vmatpush1.msra.mxu0 0.0
    %1767 = vmatprep.subr.mxu0 0.0
    %1768 = vmatpush1.msra.mxu0 0.0
    %1769 = vmatprep.subr.mxu0 0.0
    %1770 = vmatpush1.msra.mxu0 0.0
    %1771 = vmatprep.subr.mxu0 0.0
    %1772 = vmatpush1.msra.mxu0 0.0
    %1773 = vmatprep.subr.mxu0 0.0
    %1774 = vmatpush1.msra.mxu0 0.0
    %1775 = vmatprep.subr.mxu0 0.0
    %1776 = vmatpush1.msra.mxu0 0.0
    %1777 = vmatprep.subr.mxu0 0.0
    %1778 = vmatpush1.msra.mxu0 0.0
    %1779 = vmatprep.subr.mxu0 0.0
    %1780 = vmatpush1.msra.mxu0 0.0
    %1781 = vmatprep.subr.mxu0 0.0
    %1782 = vmatpush1.msra.mxu0 0.0
    %1783 = vmatprep.subr.mxu0 0.0
    %1784 = vmatpush1.msra.mxu0 0.0
    %1785 = vmatprep.subr.mxu0 0.0
    %1786 = vmatpush1.msra.mxu0 0.0
    %1787 = vmatprep.subr.mxu0 0.0
    %1788 = vmatpush1.msra.mxu0 0.0
    %1789 = vmatprep.subr.mxu0 0.0
    %1790 = vmatpush1.msra.mxu0 0.0
    %1791 = vmatprep.subr.mxu0 0.0
    %1792 = vmatpush1.msra.mxu0 0.0
    %1793 = vmatprep.subr.mxu0 0.0
    %1794 = vmatpush1.msra.mxu0 0.0
    %1795 = vmatprep.subr.mxu0 0.0
    %1796 = vmatpush1.msra.mxu0 0.0
    %1797 = vmatprep.subr.mxu0 0.0
    %1798 = vmatpush1.msra.mxu0 0.0
    %1799 = vmatprep.subr.mxu0 0.0
    %1800 = vmatpush1.msra.mxu0 0.0
    %1801 = vmatprep.subr.mxu0 0.0
    %1802 = vmatpush1.msra.mxu0 0.0
    %1803 = vmatprep.subr.mxu0 0.0
    %1804 = vmatpush1.msra.mxu0 0.0
    %1805 = vmatprep.subr.mxu0 0.0
    %1806 = vmatpush1.msra.mxu0 0.0
    %1807 = vmatprep.mubr.f32.mxu0 0.0
    %1808 = vmatmul.mubr.f32.gmra.mrb[0].mxu0 %v1741
    %v1809 = vpop.f32.mrb[0].mxu0
    %v1810 = vadd.f32 %v1737, %v1809
    %v1811 = vpop.f32.mrb[0].mxu0
    %1812 = vdwg.mxu0
    %1813 = vrot.lane.b32.xlu0 %v187, 64
    %v1814 = vpop.permute.xlu0 %1813
    %v1817 = vsel %vm193, %v899, 0
    %1819 = vmatprep.subr.mxu0 0.0
    %1820 = vmatpush1.msra.mxu0 %v1814
    %1821 = vmatprep.subr.mxu0 0.0
    %1822 = vmatpush1.msra.mxu0 0.0
    %1823 = vmatprep.subr.mxu0 0.0
    %1824 = vmatpush1.msra.mxu0 0.0
    %1825 = vmatprep.subr.mxu0 0.0
    %1826 = vmatpush1.msra.mxu0 0.0
    %1827 = vmatprep.subr.mxu0 0.0
    %1828 = vmatpush1.msra.mxu0 0.0
    %1829 = vmatprep.subr.mxu0 0.0
    %1830 = vmatpush1.msra.mxu0 0.0
    %1831 = vmatprep.subr.mxu0 0.0
    %1832 = vmatpush1.msra.mxu0 0.0
    %1833 = vmatprep.subr.mxu0 0.0
    %1834 = vmatpush1.msra.mxu0 0.0
    %1835 = vmatprep.subr.mxu0 0.0
    %1836 = vmatpush1.msra.mxu0 0.0
    %1837 = vmatprep.subr.mxu0 0.0
    %1838 = vmatpush1.msra.mxu0 0.0
    %1839 = vmatprep.subr.mxu0 0.0
    %1840 = vmatpush1.msra.mxu0 0.0
    %1841 = vmatprep.subr.mxu0 0.0
    %1842 = vmatpush1.msra.mxu0 0.0
    %1843 = vmatprep.subr.mxu0 0.0
    %1844 = vmatpush1.msra.mxu0 0.0
    %1845 = vmatprep.subr.mxu0 0.0
    %1846 = vmatpush1.msra.mxu0 0.0
    %1847 = vmatprep.subr.mxu0 0.0
    %1848 = vmatpush1.msra.mxu0 0.0
    %1849 = vmatprep.subr.mxu0 0.0
    %1850 = vmatpush1.msra.mxu0 0.0
    %1851 = vmatprep.subr.mxu0 0.0
    %1852 = vmatpush1.msra.mxu0 0.0
    %1853 = vmatprep.subr.mxu0 0.0
    %1854 = vmatpush1.msra.mxu0 0.0
    %1855 = vmatprep.subr.mxu0 0.0
    %1856 = vmatpush1.msra.mxu0 0.0
    %1857 = vmatprep.subr.mxu0 0.0
    %1858 = vmatpush1.msra.mxu0 0.0
    %1859 = vmatprep.subr.mxu0 0.0
    %1860 = vmatpush1.msra.mxu0 0.0
    %1861 = vmatprep.subr.mxu0 0.0
    %1862 = vmatpush1.msra.mxu0 0.0
    %1863 = vmatprep.subr.mxu0 0.0
    %1864 = vmatpush1.msra.mxu0 0.0
    %1865 = vmatprep.subr.mxu0 0.0
    %1866 = vmatpush1.msra.mxu0 0.0
    %1867 = vmatprep.subr.mxu0 0.0
    %1868 = vmatpush1.msra.mxu0 0.0
    %1869 = vmatprep.subr.mxu0 0.0
    %1870 = vmatpush1.msra.mxu0 0.0
    %1871 = vmatprep.subr.mxu0 0.0
    %1872 = vmatpush1.msra.mxu0 0.0
    %1873 = vmatprep.subr.mxu0 0.0
    %1874 = vmatpush1.msra.mxu0 0.0
    %1875 = vmatprep.subr.mxu0 0.0
    %1876 = vmatpush1.msra.mxu0 0.0
    %1877 = vmatprep.subr.mxu0 0.0
    %1878 = vmatpush1.msra.mxu0 0.0
    %1879 = vmatprep.subr.mxu0 0.0
    %1880 = vmatpush1.msra.mxu0 0.0
    %1881 = vmatprep.subr.mxu0 0.0
    %1882 = vmatpush1.msra.mxu0 0.0
    %1883 = vmatprep.mubr.f32.mxu0 0.0
    %1884 = vmatmul.mubr.f32.gmra.mrb[0].mxu0 %v1817
    %v1885 = vpop.f32.mrb[0].mxu0
    %v1886 = vadd.f32 0.0, %v1885
    %v1887 = vpop.f32.mrb[0].mxu0
    %1888 = vdwg.mxu0
    %v1890 = vsel %vm193, %v1886, 0
    %1892 = vmatprep.subr.mxu0 0.0
    %1893 = vmatpush1.msra.mxu0 %v1285
    %1894 = vmatprep.subr.mxu0 0.0
    %1895 = vmatpush1.msra.mxu0 0.0
    %1896 = vmatprep.subr.mxu0 0.0
    %1897 = vmatpush1.msra.mxu0 0.0
    %1898 = vmatprep.subr.mxu0 0.0
    %1899 = vmatpush1.msra.mxu0 0.0
    %1900 = vmatprep.subr.mxu0 0.0
    %1901 = vmatpush1.msra.mxu0 0.0
    %1902 = vmatprep.subr.mxu0 0.0
    %1903 = vmatpush1.msra.mxu0 0.0
    %1904 = vmatprep.subr.mxu0 0.0
    %1905 = vmatpush1.msra.mxu0 0.0
    %1906 = vmatprep.subr.mxu0 0.0
    %1907 = vmatpush1.msra.mxu0 0.0
    %1908 = vmatprep.subr.mxu0 0.0
    %1909 = vmatpush1.msra.mxu0 0.0
    %1910 = vmatprep.subr.mxu0 0.0
    %1911 = vmatpush1.msra.mxu0 0.0
    %1912 = vmatprep.subr.mxu0 0.0
    %1913 = vmatpush1.msra.mxu0 0.0
    %1914 = vmatprep.subr.mxu0 0.0
    %1915 = vmatpush1.msra.mxu0 0.0
    %1916 = vmatprep.subr.mxu0 0.0
    %1917 = vmatpush1.msra.mxu0 0.0
    %1918 = vmatprep.subr.mxu0 0.0
    %1919 = vmatpush1.msra.mxu0 0.0
    %1920 = vmatprep.subr.mxu0 0.0
    %1921 = vmatpush1.msra.mxu0 0.0
    %1922 = vmatprep.subr.mxu0 0.0
    %1923 = vmatpush1.msra.mxu0 0.0
    %1924 = vmatprep.subr.mxu0 0.0
    %1925 = vmatpush1.msra.mxu0 0.0
    %1926 = vmatprep.subr.mxu0 0.0
    %1927 = vmatpush1.msra.mxu0 0.0
    %1928 = vmatprep.subr.mxu0 0.0
    %1929 = vmatpush1.msra.mxu0 0.0
    %1930 = vmatprep.subr.mxu0 0.0
    %1931 = vmatpush1.msra.mxu0 0.0
    %1932 = vmatprep.subr.mxu0 0.0
    %1933 = vmatpush1.msra.mxu0 0.0
    %1934 = vmatprep.subr.mxu0 0.0
    %1935 = vmatpush1.msra.mxu0 0.0
    %1936 = vmatprep.subr.mxu0 0.0
    %1937 = vmatpush1.msra.mxu0 0.0
    %1938 = vmatprep.subr.mxu0 0.0
    %1939 = vmatpush1.msra.mxu0 0.0
    %1940 = vmatprep.subr.mxu0 0.0
    %1941 = vmatpush1.msra.mxu0 0.0
    %1942 = vmatprep.subr.mxu0 0.0
    %1943 = vmatpush1.msra.mxu0 0.0
    %1944 = vmatprep.subr.mxu0 0.0
    %1945 = vmatpush1.msra.mxu0 0.0
    %1946 = vmatprep.subr.mxu0 0.0
    %1947 = vmatpush1.msra.mxu0 0.0
    %1948 = vmatprep.subr.mxu0 0.0
    %1949 = vmatpush1.msra.mxu0 0.0
    %1950 = vmatprep.subr.mxu0 0.0
    %1951 = vmatpush1.msra.mxu0 0.0
    %1952 = vmatprep.subr.mxu0 0.0
    %1953 = vmatpush1.msra.mxu0 0.0
    %1954 = vmatprep.subr.mxu0 0.0
    %1955 = vmatpush1.msra.mxu0 0.0
    %1956 = vmatprep.mubr.f32.mxu0 0.0
    %1957 = vmatmul.mubr.f32.gmra.mrb[0].mxu0 %v1890
    %v1958 = vpop.f32.mrb[0].mxu0
    %v1959 = vadd.f32 0.0, %v1958
    %v1960 = vpop.f32.mrb[0].mxu0
    %1961 = vdwg.mxu0
    %v1962 = vadd.f32 %v1810, %v1959
    %1963 = vrot.lane.b32.xlu0 %v187, 40
    %v1964 = vpop.permute.xlu0 %1963
    %v1967 = vsel %vm193, %v900, 0
    %1969 = vmatprep.subr.mxu0 0.0
    %1970 = vmatpush1.msra.mxu0 %v1964
    %1971 = vmatprep.subr.mxu0 0.0
    %1972 = vmatpush1.msra.mxu0 0.0
    %1973 = vmatprep.subr.mxu0 0.0
    %1974 = vmatpush1.msra.mxu0 0.0
    %1975 = vmatprep.subr.mxu0 0.0
    %1976 = vmatpush1.msra.mxu0 0.0
    %1977 = vmatprep.subr.mxu0 0.0
    %1978 = vmatpush1.msra.mxu0 0.0
    %1979 = vmatprep.subr.mxu0 0.0
    %1980 = vmatpush1.msra.mxu0 0.0
    %1981 = vmatprep.subr.mxu0 0.0
    %1982 = vmatpush1.msra.mxu0 0.0
    %1983 = vmatprep.subr.mxu0 0.0
    %1984 = vmatpush1.msra.mxu0 0.0
    %1985 = vmatprep.subr.mxu0 0.0
    %1986 = vmatpush1.msra.mxu0 0.0
    %1987 = vmatprep.subr.mxu0 0.0
    %1988 = vmatpush1.msra.mxu0 0.0
    %1989 = vmatprep.subr.mxu0 0.0
    %1990 = vmatpush1.msra.mxu0 0.0
    %1991 = vmatprep.subr.mxu0 0.0
    %1992 = vmatpush1.msra.mxu0 0.0
    %1993 = vmatprep.subr.mxu0 0.0
    %1994 = vmatpush1.msra.mxu0 0.0
    %1995 = vmatprep.subr.mxu0 0.0
    %1996 = vmatpush1.msra.mxu0 0.0
    %1997 = vmatprep.subr.mxu0 0.0
    %1998 = vmatpush1.msra.mxu0 0.0
    %1999 = vmatprep.subr.mxu0 0.0
    %2000 = vmatpush1.msra.mxu0 0.0
    %2001 = vmatprep.subr.mxu0 0.0
    %2002 = vmatpush1.msra.mxu0 0.0
    %2003 = vmatprep.subr.mxu0 0.0
    %2004 = vmatpush1.msra.mxu0 0.0
    %2005 = vmatprep.subr.mxu0 0.0
    %2006 = vmatpush1.msra.mxu0 0.0
    %2007 = vmatprep.subr.mxu0 0.0
    %2008 = vmatpush1.msra.mxu0 0.0
    %2009 = vmatprep.subr.mxu0 0.0
    %2010 = vmatpush1.msra.mxu0 0.0
    %2011 = vmatprep.subr.mxu0 0.0
    %2012 = vmatpush1.msra.mxu0 0.0
    %2013 = vmatprep.subr.mxu0 0.0
    %2014 = vmatpush1.msra.mxu0 0.0
    %2015 = vmatprep.subr.mxu0 0.0
    %2016 = vmatpush1.msra.mxu0 0.0
    %2017 = vmatprep.subr.mxu0 0.0
    %2018 = vmatpush1.msra.mxu0 0.0
    %2019 = vmatprep.subr.mxu0 0.0
    %2020 = vmatpush1.msra.mxu0 0.0
    %2021 = vmatprep.subr.mxu0 0.0
    %2022 = vmatpush1.msra.mxu0 0.0
    %2023 = vmatprep.subr.mxu0 0.0
    %2024 = vmatpush1.msra.mxu0 0.0
    %2025 = vmatprep.subr.mxu0 0.0
    %2026 = vmatpush1.msra.mxu0 0.0
    %2027 = vmatprep.subr.mxu0 0.0
    %2028 = vmatpush1.msra.mxu0 0.0
    %2029 = vmatprep.subr.mxu0 0.0
    %2030 = vmatpush1.msra.mxu0 0.0
    %2031 = vmatprep.subr.mxu0 0.0
    %2032 = vmatpush1.msra.mxu0 0.0
    %2033 = vmatprep.mubr.f32.mxu0 0.0
    %2034 = vmatmul.mubr.f32.gmra.mrb[0].mxu0 %v1967
    %v2035 = vpop.f32.mrb[0].mxu0
    %v2036 = vadd.f32 0.0, %v2035
    %v2037 = vpop.f32.mrb[0].mxu0
    %2038 = vdwg.mxu0
    %v2040 = vsel %vm193, %v2036, 0
    %2042 = vmatprep.subr.mxu0 0.0
    %2043 = vmatpush1.msra.mxu0 %v1439
    %2044 = vmatprep.subr.mxu0 0.0
    %2045 = vmatpush1.msra.mxu0 0.0
    %2046 = vmatprep.subr.mxu0 0.0
    %2047 = vmatpush1.msra.mxu0 0.0
    %2048 = vmatprep.subr.mxu0 0.0
    %2049 = vmatpush1.msra.mxu0 0.0
    %2050 = vmatprep.subr.mxu0 0.0
    %2051 = vmatpush1.msra.mxu0 0.0
    %2052 = vmatprep.subr.mxu0 0.0
    %2053 = vmatpush1.msra.mxu0 0.0
    %2054 = vmatprep.subr.mxu0 0.0
    %2055 = vmatpush1.msra.mxu0 0.0
    %2056 = vmatprep.subr.mxu0 0.0
    %2057 = vmatpush1.msra.mxu0 0.0
    %2058 = vmatprep.subr.mxu0 0.0
    %2059 = vmatpush1.msra.mxu0 0.0
    %2060 = vmatprep.subr.mxu0 0.0
    %2061 = vmatpush1.msra.mxu0 0.0
    %2062 = vmatprep.subr.mxu0 0.0
    %2063 = vmatpush1.msra.mxu0 0.0
    %2064 = vmatprep.subr.mxu0 0.0
    %2065 = vmatpush1.msra.mxu0 0.0
    %2066 = vmatprep.subr.mxu0 0.0
    %2067 = vmatpush1.msra.mxu0 0.0
    %2068 = vmatprep.subr.mxu0 0.0
    %2069 = vmatpush1.msra.mxu0 0.0
    %2070 = vmatprep.subr.mxu0 0.0
    %2071 = vmatpush1.msra.mxu0 0.0
    %2072 = vmatprep.subr.mxu0 0.0
    %2073 = vmatpush1.msra.mxu0 0.0
    %2074 = vmatprep.subr.mxu0 0.0
    %2075 = vmatpush1.msra.mxu0 0.0
    %2076 = vmatprep.subr.mxu0 0.0
    %2077 = vmatpush1.msra.mxu0 0.0
    %2078 = vmatprep.subr.mxu0 0.0
    %2079 = vmatpush1.msra.mxu0 0.0
    %2080 = vmatprep.subr.mxu0 0.0
    %2081 = vmatpush1.msra.mxu0 0.0
    %2082 = vmatprep.subr.mxu0 0.0
    %2083 = vmatpush1.msra.mxu0 0.0
    %2084 = vmatprep.subr.mxu0 0.0
    %2085 = vmatpush1.msra.mxu0 0.0
    %2086 = vmatprep.subr.mxu0 0.0
    %2087 = vmatpush1.msra.mxu0 0.0
    %2088 = vmatprep.subr.mxu0 0.0
    %2089 = vmatpush1.msra.mxu0 0.0
    %2090 = vmatprep.subr.mxu0 0.0
    %2091 = vmatpush1.msra.mxu0 0.0
    %2092 = vmatprep.subr.mxu0 0.0
    %2093 = vmatpush1.msra.mxu0 0.0
    %2094 = vmatprep.subr.mxu0 0.0
    %2095 = vmatpush1.msra.mxu0 0.0
    %2096 = vmatprep.subr.mxu0 0.0
    %2097 = vmatpush1.msra.mxu0 0.0
    %2098 = vmatprep.subr.mxu0 0.0
    %2099 = vmatpush1.msra.mxu0 0.0
    %2100 = vmatprep.subr.mxu0 0.0
    %2101 = vmatpush1.msra.mxu0 0.0
    %2102 = vmatprep.subr.mxu0 0.0
    %2103 = vmatpush1.msra.mxu0 0.0
    %2104 = vmatprep.subr.mxu0 0.0
    %2105 = vmatpush1.msra.mxu0 0.0
    %2106 = vmatprep.mubr.f32.mxu0 0.0
    %2107 = vmatmul.mubr.f32.gmra.mrb[0].mxu0 %v2040
    %v2108 = vpop.f32.mrb[0].mxu0
    %v2109 = vadd.f32 0.0, %v2108
    %v2110 = vpop.f32.mrb[0].mxu0
    %2111 = vdwg.mxu0
    %v2112 = vadd.f32 %v1962, %v2109
    %v2113 = vld [vmem:[#allocation5 + $0x3] sm:$0x1]
    %v2114 = vlaneseq
    %v2115 = vshrl.u32 %v2114, 7
    %v2116 = vsub.s32 0, %v2115
    %v2117 = vrot.slane %v2113, %v2116
    %v2118 = vadd.f32 %v1514, %v2117
    %v2119 = vadd.f32 %v2112, %v2117
    %v2120 = vadd.f32 %v2118, %v56
    %v2121 = vadd.f32 %v2119, %v57
    %v2122 = vld [vmem:[#allocation5 + $0x4] sm:$0x1]
    %v2123 = vld [vmem:[#allocation5 + $0x5] sm:$0x1]
    %v2124 = vsel %vm60, %v2120, 0.0
    %2125 = vadd.xlane.f32.xlu0 %v2124
    %v2126 = vpop.xlane.xlu0 %2125
    %v2127 = vsel %vm60, %v2121, 0.0
    %2128 = vadd.xlane.f32.xlu0 %v2127
    %v2129 = vpop.xlane.xlu0 %2128
    %v2130 = vmul.f32 %v2126, %v67
    %v2131 = vmul.f32 %v2129, %v67
    %v2132 = vsub.f32 %v2120, %v2130
    %v2133 = vsub.f32 %v2121, %v2131
    %v2134 = vmul.f32 %v2132, %v2132
    %v2135 = vmul.f32 %v2133, %v2133
    %v2136 = vsel %vm60, %v2134, 0.0
    %2137 = vadd.xlane.f32.xlu0 %v2136
    %v2138 = vpop.xlane.xlu0 %2137
    %v2139 = vsel %vm60, %v2135, 0.0
    %2140 = vadd.xlane.f32.xlu0 %v2139
    %v2141 = vpop.xlane.xlu0 %2140
    %v2142 = vmul.f32 %v2138, %v67
    %v2143 = vmul.f32 %v2141, %v67
    %v2144 = vadd.f32 %v2142, 1e-06
    %v2145 = vadd.f32 %v2143, 1e-06
    %v2146 = vrsqrt.pop %v2144
    %v2147 = vrsqrt.pop %v2145
    %v2148 = vmul.f32 %v2132, %v2146
    %v2149 = vmul.f32 %v2133, %v2147
    %v2150 = vlaneseq
    %v2151 = vshrl.u32 %v2150, 7
    %v2152 = vsub.s32 0, %v2151
    %v2153 = vrot.slane %v2122, %v2152
    %v2154 = vmul.f32 %v2148, %v2153
    %v2155 = vmul.f32 %v2149, %v2153
    %v2156 = vlaneseq
    %v2157 = vshrl.u32 %v2156, 7
    %v2158 = vsub.s32 0, %v2157
    %v2159 = vrot.slane %v2123, %v2158
    %v2160 = vadd.f32 %v2154, %v2159
    %v2161 = vadd.f32 %v2155, %v2159
    %v2162 = vld [vmem:[#allocation7 + $0x8] sm:$0xff]
    %v2163 = vld [vmem:[#allocation7 + $0x18] sm:$0xff]
    %v2164 = vld [vmem:[#allocation7 + $0x28] sm:$0xff]
    %v2165 = vld [vmem:[#allocation7 + $0x38] sm:$0xff]
    %v2166 = vld [vmem:[#allocation5 + $0x6] sm:$0x1]
    %v2167 = vlaneseq
    %v2168 = vshrl.u32 %v2167, 7
    %v2169 = vsub.s32 0, %v2168
    %v2170 = vrot.slane %v2166, %v2169
    %v2172 = vsel %vm60, %v2160, 0
    %v2175 = vsel %vm60, %v2161, 0
    %2177 = vmatprep.subr.mxu0 0.0
    %2178 = vmatpush1.msra.mxu0 %v2162
    %2179 = vmatprep.subr.mxu0 0.0
    %2180 = vmatpush1.msra.mxu0 %v2163
    %2181 = vmatprep.subr.mxu0 0.0
    %2182 = vmatpush1.msra.mxu0 %v2164
    %2183 = vmatprep.subr.mxu0 0.0
    %2184 = vmatpush1.msra.mxu0 %v2165
    %2185 = vmatprep.subr.mxu0 0.0
    %2186 = vmatpush1.msra.mxu0 0.0
    %2187 = vmatprep.subr.mxu0 0.0
    %2188 = vmatpush1.msra.mxu0 0.0
    %2189 = vmatprep.subr.mxu0 0.0
    %2190 = vmatpush1.msra.mxu0 0.0
    %2191 = vmatprep.subr.mxu0 0.0
    %2192 = vmatpush1.msra.mxu0 0.0
    %2193 = vmatprep.subr.mxu0 0.0
    %2194 = vmatpush1.msra.mxu0 0.0
    %2195 = vmatprep.subr.mxu0 0.0
    %2196 = vmatpush1.msra.mxu0 0.0
    %2197 = vmatprep.subr.mxu0 0.0
    %2198 = vmatpush1.msra.mxu0 0.0
    %2199 = vmatprep.subr.mxu0 0.0
    %2200 = vmatpush1.msra.mxu0 0.0
    %2201 = vmatprep.subr.mxu0 0.0
    %2202 = vmatpush1.msra.mxu0 0.0
    %2203 = vmatprep.subr.mxu0 0.0
    %2204 = vmatpush1.msra.mxu0 0.0
    %2205 = vmatprep.subr.mxu0 0.0
    %2206 = vmatpush1.msra.mxu0 0.0
    %2207 = vmatprep.subr.mxu0 0.0
    %2208 = vmatpush1.msra.mxu0 0.0
    %2209 = vmatprep.subr.mxu0 0.0
    %2210 = vmatpush1.msra.mxu0 0.0
    %2211 = vmatprep.subr.mxu0 0.0
    %2212 = vmatpush1.msra.mxu0 0.0
    %2213 = vmatprep.subr.mxu0 0.0
    %2214 = vmatpush1.msra.mxu0 0.0
    %2215 = vmatprep.subr.mxu0 0.0
    %2216 = vmatpush1.msra.mxu0 0.0
    %2217 = vmatprep.subr.mxu0 0.0
    %2218 = vmatpush1.msra.mxu0 0.0
    %2219 = vmatprep.subr.mxu0 0.0
    %2220 = vmatpush1.msra.mxu0 0.0
    %2221 = vmatprep.subr.mxu0 0.0
    %2222 = vmatpush1.msra.mxu0 0.0
    %2223 = vmatprep.subr.mxu0 0.0
    %2224 = vmatpush1.msra.mxu0 0.0
    %2225 = vmatprep.subr.mxu0 0.0
    %2226 = vmatpush1.msra.mxu0 0.0
    %2227 = vmatprep.subr.mxu0 0.0
    %2228 = vmatpush1.msra.mxu0 0.0
    %2229 = vmatprep.subr.mxu0 0.0
    %2230 = vmatpush1.msra.mxu0 0.0
    %2231 = vmatprep.subr.mxu0 0.0
    %2232 = vmatpush1.msra.mxu0 0.0
    %2233 = vmatprep.subr.mxu0 0.0
    %2234 = vmatpush1.msra.mxu0 0.0
    %2235 = vmatprep.subr.mxu0 0.0
    %2236 = vmatpush1.msra.mxu0 0.0
    %2237 = vmatprep.subr.mxu0 0.0
    %2238 = vmatpush1.msra.mxu0 0.0
    %2239 = vmatprep.subr.mxu0 0.0
    %2240 = vmatpush1.msra.mxu0 0.0
    %2241 = vmatprep.mubr.f32.mxu0 0.0
    %2242 = vmatmul.mubr.f32.gmra.mrb[0].mxu0 %v2172
    %v2243 = vpop.f32.mrb[0].mxu0
    %v2244 = vadd.f32 %v2170, %v2243
    %v2245 = vpop.f32.mrb[0].mxu0
    %2246 = vmatprep.mubr.f32.mxu0 0.0
    %2247 = vmatmul.mubr.f32.gmra.mrb[0].mxu0 %v2175
    %v2248 = vpop.f32.mrb[0].mxu0
    %v2249 = vadd.f32 %v2170, %v2248
    %v2250 = vpop.f32.mrb[0].mxu0
    %2251 = vdwg.mxu0
    %v2252 = vmul.f32 %v2244, 0.5
    %v2253 = vmul.f32 %v2249, 0.5
    %v2254 = vmul.f32 %v2244, 0.70710677
    %v2255 = vmul.f32 %v2249, 0.70710677
    %v2256 = verf.f32.pop %v2254
    %v2257 = verf.f32.pop %v2255
    %v2258 = vadd.f32 %v2256, 1.0
    %v2259 = vadd.f32 %v2257, 1.0
    %v2260 = vmul.f32 %v2252, %v2258
    %v2261 = vmul.f32 %v2253, %v2259
    %v2262 = vld [vmem:[#allocation5 + $0x7] sm:$0x1]
    %v2263 = vlaneseq
    %v2264 = vshrl.u32 %v2263, 7
    %v2265 = vsub.s32 0, %v2264
    %v2266 = vrot.slane %v2262, %v2265
    %2271 = vrot.lane.b32.xlu0 %v2162, 64
    %v2272 = vpop.permute.xlu0 %2271
    %2273 = vrot.lane.b32.xlu0 %v2163, 64
    %v2274 = vpop.permute.xlu0 %2273
    %2275 = vrot.lane.b32.xlu0 %v2164, 64
    %v2276 = vpop.permute.xlu0 %2275
    %2277 = vrot.lane.b32.xlu0 %v2165, 64
    %v2278 = vpop.permute.xlu0 %2277
    %vm2279 = vcmask 523264
    %v2281 = vsel %vm2279, %v2260, 0
    %v2284 = vsel %vm2279, %v2261, 0
    %v2286 = vsel %vm2279, %v2272, 0
    %v2288 = vsel %vm2279, %v2274, 0
    %v2290 = vsel %vm2279, %v2276, 0
    %v2292 = vsel %vm2279, %v2278, 0
    %2294 = vmatprep.subr.mxu0 0.0
    %2295 = vmatpush1.xpose.msra.mxu0 %v2286
    %2296 = vmatprep.subr.mxu0 0.0
    %2297 = vmatpush1.xpose.msra.mxu0 %v2288
    %2298 = vmatprep.subr.mxu0 0.0
    %2299 = vmatpush1.xpose.msra.mxu0 %v2290
    %2300 = vmatprep.subr.mxu0 0.0
    %2301 = vmatpush1.xpose.msra.mxu0 %v2292
    %2302 = vmatprep.subr.mxu0 0.0
    %2303 = vmatpush1.xpose.msra.mxu0 0.0
    %2304 = vmatprep.subr.mxu0 0.0
    %2305 = vmatpush1.xpose.msra.mxu0 0.0
    %2306 = vmatprep.subr.mxu0 0.0
    %2307 = vmatpush1.xpose.msra.mxu0 0.0
    %2308 = vmatprep.subr.mxu0 0.0
    %2309 = vmatpush1.xpose.msra.mxu0 0.0
    %2310 = vmatprep.subr.mxu0 0.0
    %2311 = vmatpush1.xpose.msra.mxu0 0.0
    %2312 = vmatprep.subr.mxu0 0.0
    %2313 = vmatpush1.xpose.msra.mxu0 0.0
    %2314 = vmatprep.subr.mxu0 0.0
    %2315 = vmatpush1.xpose.msra.mxu0 0.0
    %2316 = vmatprep.subr.mxu0 0.0
    %2317 = vmatpush1.xpose.msra.mxu0 0.0
    %2318 = vmatprep.subr.mxu0 0.0
    %2319 = vmatpush1.xpose.msra.mxu0 0.0
    %2320 = vmatprep.subr.mxu0 0.0
    %2321 = vmatpush1.xpose.msra.mxu0 0.0
    %2322 = vmatprep.subr.mxu0 0.0
    %2323 = vmatpush1.xpose.msra.mxu0 0.0
    %2324 = vmatprep.subr.mxu0 0.0
    %2325 = vmatpush1.xpose.msra.mxu0 0.0
    %2326 = vmatprep.subr.mxu0 0.0
    %2327 = vmatpush1.xpose.msra.mxu0 0.0
    %2328 = vmatprep.subr.mxu0 0.0
    %2329 = vmatpush1.xpose.msra.mxu0 0.0
    %2330 = vmatprep.subr.mxu0 0.0
    %2331 = vmatpush1.xpose.msra.mxu0 0.0
    %2332 = vmatprep.subr.mxu0 0.0
    %2333 = vmatpush1.xpose.msra.mxu0 0.0
    %2334 = vmatprep.subr.mxu0 0.0
    %2335 = vmatpush1.xpose.msra.mxu0 0.0
    %2336 = vmatprep.subr.mxu0 0.0
    %2337 = vmatpush1.xpose.msra.mxu0 0.0
    %2338 = vmatprep.subr.mxu0 0.0
    %2339 = vmatpush1.xpose.msra.mxu0 0.0
    %2340 = vmatprep.subr.mxu0 0.0
    %2341 = vmatpush1.xpose.msra.mxu0 0.0
    %2342 = vmatprep.subr.mxu0 0.0
    %2343 = vmatpush1.xpose.msra.mxu0 0.0
    %2344 = vmatprep.subr.mxu0 0.0
    %2345 = vmatpush1.xpose.msra.mxu0 0.0
    %2346 = vmatprep.subr.mxu0 0.0
    %2347 = vmatpush1.xpose.msra.mxu0 0.0
    %2348 = vmatprep.subr.mxu0 0.0
    %2349 = vmatpush1.xpose.msra.mxu0 0.0
    %2350 = vmatprep.subr.mxu0 0.0
    %2351 = vmatpush1.xpose.msra.mxu0 0.0
    %2352 = vmatprep.subr.mxu0 0.0
    %2353 = vmatpush1.xpose.msra.mxu0 0.0
    %2354 = vmatprep.subr.mxu0 0.0
    %2355 = vmatpush1.xpose.msra.mxu0 0.0
    %2356 = vmatprep.subr.mxu0 0.0
    %2357 = vmatpush1.xpose.msra.mxu0 0.0
    %2358 = vmatprep.mubr.f32.mxu0 0.0
    %2359 = vmatmul.mubr.f32.gmra.mrb[0].mxu0 %v2281
    %v2360 = vpop.f32.mrb[0].mxu0
    %v2361 = vadd.f32 %v2266, %v2360
    %v2362 = vpop.f32.mrb[0].mxu0
    %2363 = vmatprep.mubr.f32.mxu0 0.0
    %2364 = vmatmul.mubr.f32.gmra.mrb[0].mxu0 %v2284
    %v2365 = vpop.f32.mrb[0].mxu0
    %v2366 = vadd.f32 %v2266, %v2365
    %v2367 = vpop.f32.mrb[0].mxu0
    %2368 = vdwg.mxu0
    %v2369 = vadd.f32 %v2361, %v2120
    %v2370 = vadd.f32 %v2366, %v2121
    %2371 = vst.msk [vmem:[#allocation8] sm:$0xff] %vm60, %v2369
    %2372 = vst.msk [vmem:[#allocation8 + $0x8] sm:$0xff] %vm60, %v2370
    %2373 = vst.msk [vmem:[%s4] sm:$0xff] %vm193, %v893
    %2374 = vst.msk [vmem:[%s4 + $0x8] sm:$0xff] %vm193, %v894
    %2375 = vst.msk [vmem:[%s4 + $0x10] sm:$0xff] %vm193, %v895
    %2376 = vst.msk [vmem:[%s4 + $0x18] sm:$0xff] %vm193, %v896
    %2377 = vst.msk [vmem:[%s4 + $0x20] sm:$0xff] %vm193, %v897
    %2378 = vst.msk [vmem:[%s4 + $0x28] sm:$0xff] %vm193, %v898
    %2379 = vst.msk [vmem:[%s4 + $0x30] sm:$0xff] %vm193, %v899
    %2380 = vst.msk [vmem:[%s4 + $0x38] sm:$0xff] %vm193, %v900
    // Predicated region
    $region26: #{tpu_custom_call.1} parent=1 // pred_check
      _
    $region27: #{tpu_custom_call.1} parent=1 // pred_check_branch
      %2382 = sbr.rel (0) target = $region29
    $region28: #{tpu_custom_call.1} parent=1 // pred_region
      %s2384 = ssub.s32 256, 256
      %2385 = vsyncadd [#allocation4], %s2384
      %s2386 = sshll.u32 [#allocation8], 4
      %s2387 = int_to_ptr.vmem [resolvable:$true] %s2386
      %2392 = dma.vmem_to_hbm [thread:$0]  %s2387, 256, %s3, [#allocation4], 128, 128, 8
    $region29: #{tpu_custom_call.1} parent=1 // pred_fallthru
      _
    // Predicated region
    $region30: #{tpu_custom_call.1} parent=1 // pred_check
      _
    $region31: #{tpu_custom_call.1} parent=1 // pred_check_branch
      %2394 = sbr.rel (0) target = $region33
    $region32: #{tpu_custom_call.1} parent=1 // pred_region
      _
    $region33: #{tpu_custom_call.1} parent=1 // pred_fallthru
      _
    // Predicated region
    $region34: #{tpu_custom_call.1} parent=1 // pred_check
      _
    $region35: #{tpu_custom_call.1} parent=1 // pred_check_branch
      %2396 = sbr.rel (0) target = $region37
    $region36: #{tpu_custom_call.1} parent=1 // pred_region
      %2397 = dma.done [#allocation4], 256
    $region37: #{tpu_custom_call.1} parent=1 // pred_fallthru
      _
    // Predicated region
    $region38: #{tpu_custom_call.1} parent=1 // pred_check
      _
    $region39: #{tpu_custom_call.1} parent=1 // pred_check_branch
      %2399 = sbr.rel (0) target = $region41
    $region40: #{tpu_custom_call.1} parent=1 // pred_region
      _
    $region41: #{tpu_custom_call.1} parent=1 // pred_fallthru
      _
    %2400 = vsyncpa [#allocation3], 1
    %2401 = vsyncpa [#allocation6], 1
    %2402 = vsyncpa [#allocation4], 1

</llo_original>
